<compile_context>
chip_gen: v5e
topology: v5e:2x2
jax: 0.10.0
libtpu: 0.0.40
codegen_flags: <defaults>
</compile_context>

<pallas_src>
import functools

import jax
import jax.numpy as jnp
from jax.experimental import pallas as pl
from jax.experimental.pallas import tpu as pltpu

TAYLOR_N = 5          # UCBase.taylor_n (fbase='tlr' -> int() raises -> keeps 5), odd=2
BN_EPS = 1e-5         # torch BatchNorm default eps
NORM_EPS = 1e-12      # torch F.normalize default eps
TN = 8                # samples per grid step (sublane-dense output rows).
                      # On v5e/v6e with real batch sizes, sweep 16-32.


def _round_up(x, m):
    return (x + m - 1) // m * m


# ---------------------------------------------------------------------------
# Fused kernel: per grid step = TN samples x one HW chunk.
#   x_ref:     (TN, C, HWC)  bf16  activation chunk, native NCHW layout
#   wt_ref:    (D_out, C)    bf16  conv weight, pre-transposed, zero-padded rows
#   b_ref:     (D_out, 1)    f32   conv bias column (zero in padded rows)
#   scale_ref: (1, D_out)    f32   folded bottleneck-BN scale (0 in padded lanes)
#   shift_ref: (1, D_out)    f32   folded bottleneck-BN shift (0 in padded lanes)
#   scal_ref:  (3+T,)        f32   SMEM [bn_norm_rm, rsqrt(bn_norm_rv+eps),
#                                        avg_uc, uc_k...]
#   out_ref:   (TN, D_out)   f32   feat in lanes [0, n_feat), uc_r in lane n_feat
#   acc_ref:   (D_out, TN)   f32   GAP accumulator (persists across HW chunks)
# ---------------------------------------------------------------------------
def _fused_kernel(x_ref, wt_ref, b_ref, scale_ref, shift_ref, scal_ref,
                  out_ref, acc_ref, *, tn, hw, n_feat, taylor_n):
    h = pl.program_id(1)

    @pl.when(h == 0)
    def _():
        acc_ref[...] = jnp.zeros_like(acc_ref)

    # ---- 1x1 conv + ReLU + (partial) GAP, all kept in vregs -----------------
    wt = wt_ref[...]                                    # (D_out, C) bf16, resident
    b = b_ref[...]                                      # (D_out, 1) f32
    cols = []
    for i in range(tn):                                 # TN small 2-D MXU matmuls
        y = jnp.dot(wt, x_ref[i],                       # (D_out, HWC), f32 accum
                    preferred_element_type=jnp.float32)
        y = jnp.maximum(y + b, 0.0)
        cols.append(jnp.sum(y, axis=1, keepdims=True))  # (D_out, 1) lane reduce
    acc_ref[...] += jnp.concatenate(cols, axis=1)       # (D_out, TN)

    # ---- UC head epilogue, once per TN-block on the last HW chunk -----------
    @pl.when(h == pl.num_programs(1) - 1)
    def _():
        g = acc_ref[...].T * (1.0 / hw)                 # (TN, D_out) pooled feats

        # f_norm = global_feat.norm(dim=-1)  (padded lanes of g are exactly 0)
        f_norm = jnp.sqrt(jnp.sum(g * g, axis=-1, keepdims=True))   # (TN, 1)

        rm_n = scal_ref[0]          # bn_norm running mean
        inv_sd_n = scal_ref[1]      # rsqrt(bn_norm running var + eps)
        avg_uc = scal_ref[2]

        # BatchNorm1d(1), eval mode, weight=1 / bias=0 (frozen)
        xn = (f_norm - rm_n) * inv_sd_n                 # (TN, 1)

        # fbase == 'tlr', odd == 2:  uc_r = sum_k uc_k[k] * x**(2k+1) - avg_uc
        x2 = xn * xn
        p = xn
        uc = scal_ref[3] * p
        for k in range(1, taylor_n):
            p = p * x2
            uc = uc + scal_ref[3 + k] * p
        uc = uc - avg_uc                                # (TN, 1)

        # Bottleneck BN folded into scale/shift; neck_feat == 'after':
        #   feat = F.normalize(fb) * ||global_feat||
        fb = g * scale_ref[...] + shift_ref[...]
        inv_fb_norm = jax.lax.rsqrt(
            jnp.maximum(jnp.sum(fb * fb, axis=-1, keepdims=True),
                        NORM_EPS * NORM_EPS))
        feat = fb * (f_norm * inv_fb_norm)              # (TN, D_out)

        # Pack uc_r into spare padded lane `n_feat` -> one lane-dense store,
        # no (TN, 1) partial-store output block.
        lane = jax.lax.broadcasted_iota(jnp.int32, feat.shape, 1)
        out_ref[...] = jnp.where(lane == n_feat, uc, feat)


# ---------------------------------------------------------------------------
# Wrapper
# ---------------------------------------------------------------------------
def _pick_hw_chunk(hw, c_in, tn, max_tile_bytes=2 << 20):
    """Largest 128-multiple divisor of HW whose bf16 x tile fits the budget.

    Keeps the per-buffer activation DMA small enough that double-buffering has
    headroom even on v7x (64 MiB physical VMEM) at realistic channel widths.
    """
    if tn * c_in * hw * 2 <= max_tile_bytes:
        return hw
    best = hw
    for m in range(hw // 128, 0, -1):
        chunk = m * 128
        if hw % chunk == 0:
            best = chunk
            if tn * c_in * chunk * 2 <= max_tile_bytes:
                return chunk
    return best


def uc_tri_bn_forward(x, params, *, tn=TN, hw_chunk=None):
    N, C, H, W = x.shape
    HW = H * W
    D = params["w_conv"].shape[1]
    d_out = _round_up(D + 1, 128)   # lane-dense feat block, +1 spare lane for uc

    if hw_chunk is None:
        hw_chunk = _pick_hw_chunk(HW, C, tn)
    assert HW % hw_chunk == 0 and (hw_chunk == HW or hw_chunk % 128 == 0)

    # ---- activations: native NCHW layout (free reshape), bf16 DMA stream ----
    n_pad = _round_up(N, tn)
    x3 = x.reshape(N, C, HW)
    if n_pad != N:
        x3 = jnp.pad(x3, ((0, n_pad - N), (0, 0), (0, 0)))
    x3 = x3.astype(jnp.bfloat16)

    # ---- weights: pre-transposed (D, C), zero-padded to d_out rows, bf16 ----
    wt = jnp.zeros((d_out, C), jnp.float32).at[:D].set(
        params["w_conv"].astype(jnp.float32).T).astype(jnp.bfloat16)
    b = jnp.zeros((d_out, 1), jnp.float32).at[:D, 0].set(
        params["b_conv"].reshape(-1).astype(jnp.float32))

    # Fold the bottleneck BatchNorm1d (eval) into scale/shift; padded lanes = 0.
    sc = params["bn_gamma"] * jax.lax.rsqrt(params["bn_rv"] + BN_EPS)
    sh = params["bn_beta"] - params["bn_rm"] * sc
    scale = jnp.zeros((1, d_out), jnp.float32).at[0, :D].set(sc.astype(jnp.float32))
    shift = jnp.zeros((1, d_out), jnp.float32).at[0, :D].set(sh.astype(jnp.float32))

    # Packed scalar row for SMEM: [bn_norm_rm, rsqrt(bn_norm_rv+eps), avg_uc, uc_k...]
    scal = jnp.concatenate([
        jnp.stack([jnp.asarray(params["bn_norm_rm"], jnp.float32),
                   jax.lax.rsqrt(jnp.asarray(params["bn_norm_rv"], jnp.float32) + BN_EPS),
                   jnp.asarray(params["avg_uc"], jnp.float32)]),
        params["uc_k"].astype(jnp.float32),
    ])

    # Explicit VMEM budget from the actual buffers (double-buffered x tile,
    # resident weights, output tile, accumulator, conv intermediate) + headroom;
    # clamped to 48 MiB so it is safe on v7x's 64 MiB physical VMEM.
    x_tile = tn * C * hw_chunk * 2
    resident = d_out * C * 2 + d_out * 4 + 2 * d_out * 4
    out_tile = tn * d_out * 4
    y_tmp = d_out * hw_chunk * 4
    est = 2 * (x_tile + resident + out_tile) + tn * d_out * 4 + 2 * y_tmp
    vmem_limit = int(min(max(4 * est, 16 << 20), 48 << 20))

    kernel = functools.partial(_fused_kernel, tn=tn, hw=HW, n_feat=D,
                               taylor_n=TAYLOR_N)

    out = pl.pallas_call(
        kernel,
        out_shape=jax.ShapeDtypeStruct((n_pad, d_out), jnp.float32),
        grid=(n_pad // tn, HW // hw_chunk),
        in_specs=[
            pl.BlockSpec((tn, C, hw_chunk), lambda n, h: (n, 0, h)),   # x chunk
            # Grid-invariant operands (on VMEM-tight configs they could also be
            # single-buffered via pipeline_mode=pl.Buffered(1)).
            pl.BlockSpec((d_out, C), lambda n, h: (0, 0)),             # conv weight^T
            pl.BlockSpec((d_out, 1), lambda n, h: (0, 0)),             # conv bias col
            pl.BlockSpec((1, d_out), lambda n, h: (0, 0)),             # folded BN scale
            pl.BlockSpec((1, d_out), lambda n, h: (0, 0)),             # folded BN shift
            pl.BlockSpec(memory_space=pltpu.MemorySpace.SMEM),         # packed scalars
        ],
        out_specs=pl.BlockSpec((tn, d_out), lambda n, h: (n, 0)),
        scratch_shapes=[pltpu.VMEM((d_out, tn), jnp.float32)],
        compiler_params=pltpu.CompilerParams(
            # batch axis "parallel" (megacore), HW reduction axis "arbitrary".
            # TODO(synk): for tiny batches on v7x (parallel axis = 1 step) one
            #             TensorCore idles; shrink tn or split D to fill both.
            dimension_semantics=("parallel", "arbitrary"),
            vmem_limit_bytes=vmem_limit),
    )(x3, wt, b, scale, shift, scal)

    return out[:N, :D], out[:N, D]


# ---------------------------------------------------------------------------
# Pure-JAX reference (same eval-mode semantics).  It mirrors the kernel's bf16
# rounding of x / w_conv so the comparison isolates kernel logic, not dtype.
# ---------------------------------------------------------------------------
def reference_forward(x, params):
    N, C, H, W = x.shape
    xb = x.astype(jnp.bfloat16).astype(jnp.float32)
    wb = params["w_conv"].astype(jnp.bfloat16).astype(jnp.float32)
    xr = jnp.transpose(xb.reshape(N, C, H * W), (0, 2, 1))
    y = jnp.maximum(xr @ wb + params["b_conv"].reshape(1, -1), 0.0)
    g = y.mean(axis=1)                                            # (N, D)
    f_norm = jnp.linalg.norm(g, axis=-1, keepdims=True)           # (N, 1)
    xn = (f_norm - params["bn_norm_rm"]) / jnp.sqrt(params["bn_norm_rv"] + BN_EPS)
    x_pow = jnp.concatenate([xn ** (2 * k + 1) for k in range(TAYLOR_N)], axis=-1)
    uc = (params["uc_k"] * x_pow).sum(-1) - params["avg_uc"]
    fb = (g - params["bn_rm"]) / jnp.sqrt(params["bn_rv"] + BN_EPS) \
        * params["bn_gamma"] + params["bn_beta"]
    fb_norm = jnp.maximum(jnp.linalg.norm(fb, axis=-1, keepdims=True), NORM_EPS)
    feat = fb / fb_norm * f_norm
    return feat, uc


if __name__ == "__main__":
    N, C, H, W, D = 2, 4, 16, 16, 32

    key = jax.random.PRNGKey(0)
    kx, k0, k1, k2, k3, k4, k5 = jax.random.split(key, 7)

    params = dict(
        w_conv=0.2 * jax.random.normal(k0, (C, D), jnp.float32),
        b_conv=0.05 * jax.random.normal(k1, (1, D), jnp.float32),
        bn_gamma=1.0 + 0.1 * jax.random.normal(k2, (D,), jnp.float32),
        bn_beta=jnp.zeros((D,), jnp.float32),            # bottleneck bias frozen at 0
        bn_rm=0.1 * jax.random.normal(k3, (D,), jnp.float32),
        bn_rv=1.0 + 0.1 * jnp.abs(jax.random.normal(k4, (D,), jnp.float32)),
        bn_norm_rm=jnp.float32(0.5),                     # bn_norm running stats
        bn_norm_rv=jnp.float32(1.5),
        avg_uc=jnp.float32(0.0),                         # avg_uc buffer
        uc_k=0.05 * jax.random.normal(k5, (TAYLOR_N,), jnp.float32),
    )

    x = jax.random.normal(kx, (N, C, H, W), jnp.float32)

    # hw_chunk=128 exercises the HW-chunked ("arbitrary") reduction grid axis.
    feat, uc_r = uc_tri_bn_forward(x, params, hw_chunk=128)
    feat = jax.block_until_ready(feat)
    uc_r = jax.block_until_ready(uc_r)

    feat_ref, uc_ref = reference_forward(x, params)
    assert feat.shape == (N, D) and uc_r.shape == (N,)
    assert jnp.allclose(feat, feat_ref, rtol=1e-3, atol=1e-3)
    assert jnp.allclose(uc_r, uc_ref, rtol=1e-3, atol=1e-3)

    print("KERNEL_OK")
</pallas_src>

<mosaic_0001>
module attributes {stable_mosaic.version = 11 : i64} {
  func.func @_fused_kernel(%arg0: i32, %arg1: i32, %arg2: memref<8x4x128xbf16, #tpu.memory_space<vmem>>, %arg3: memref<128x4xbf16, #tpu.memory_space<vmem>>, %arg4: memref<128x1xf32, #tpu.memory_space<vmem>>, %arg5: memref<1x128xf32, #tpu.memory_space<vmem>>, %arg6: memref<1x128xf32, #tpu.memory_space<vmem>>, %arg7: memref<8xf32, #tpu.memory_space<smem>>, %arg8: memref<8x128xf32, #tpu.memory_space<vmem>>, %arg9: memref<128x8xf32, #tpu.memory_space<vmem>>) attributes {dimension_semantics = [#tpu.dimension_semantics<parallel>, #tpu.dimension_semantics<arbitrary>], iteration_bounds = array<i64: 1, 2>, scalar_prefetch = 0 : i64, scratch_operands = 1 : i64, tpu.core_type = #tpu.core_type<tc>, window_params = [{transform_indices = @transform_0, window_bounds = array<i64: 8, 4, 128>}, {pipeline_mode = #tpu.pipeline_mode<synchronous>, transform_indices = @transform_1, window_bounds = array<i64: 128, 4>}, {pipeline_mode = #tpu.pipeline_mode<synchronous>, transform_indices = @transform_2, window_bounds = array<i64: 128, 1>}, {pipeline_mode = #tpu.pipeline_mode<synchronous>, transform_indices = @transform_3, window_bounds = array<i64: 1, 128>}, {pipeline_mode = #tpu.pipeline_mode<synchronous>, transform_indices = @transform_4, window_bounds = array<i64: 1, 128>}, {transform_indices = @transform_5, window_bounds = array<i64: 8>}, {transform_indices = @transform_6, window_bounds = array<i64: 8, 128>}]} {
    %c0_i32 = arith.constant 0 : i32
    %0 = arith.cmpi eq, %arg1, %c0_i32 : i32
    %1 = arith.extui %0 : i1 to i32
    %c0_i32_0 = arith.constant 0 : i32
    %2 = arith.cmpi ne, %1, %c0_i32_0 : i32
    scf.if %2 {
      %cst_49 = arith.constant 0.000000e+00 : f32
      %84 = vector.broadcast %cst_49 : f32 to vector<128x8xf32>
      %c0_50 = arith.constant 0 : index
      %c0_51 = arith.constant 0 : index
      %85 = vector.load %arg9[%c0_50, %c0_51] : memref<128x8xf32, #tpu.memory_space<vmem>>, vector<128x8xf32>
      tpu.vector_store %arg9[%c0_50, %c0_51], %84 {strides = array<i32>} : memref<128x8xf32, #tpu.memory_space<vmem>>, vector<128x8xf32>,
    } else {
    }
    %c0 = arith.constant 0 : index
    %c0_1 = arith.constant 0 : index
    %3 = vector.load %arg3[%c0, %c0_1] : memref<128x4xbf16, #tpu.memory_space<vmem>>, vector<128x4xbf16>
    %c0_2 = arith.constant 0 : index
    %c0_3 = arith.constant 0 : index
    %4 = vector.load %arg4[%c0_2, %c0_3] : memref<128x1xf32, #tpu.memory_space<vmem>>, vector<128x1xf32>
    %c0_4 = arith.constant 0 : index
    %c0_5 = arith.constant 0 : index
    %c0_6 = arith.constant 0 : index
    %5 = vector.load %arg2[%c0_4, %c0_5, %c0_6] : memref<8x4x128xbf16, #tpu.memory_space<vmem>>, vector<1x4x128xbf16>
    %6 = vector.shape_cast %5 : vector<1x4x128xbf16> to vector<4x128xbf16>
    %cst = arith.constant dense<0.000000e+00> : vector<128x128xf32>
    %7 = tpu.matmul %3, %6, %cst {dimension_numbers = #tpu.dot_dimension_numbers<[1], [0], [0], [1], [0, 0, 1, 1], [], []>} : vector<128x4xbf16>, vector<4x128xbf16>, vector<128x128xf32> -> vector<128x128xf32>
    %8 = vector.broadcast %4 : vector<128x1xf32> to vector<128x128xf32>
    %9 = arith.addf %7, %8 : vector<128x128xf32>
    %cst_7 = arith.constant 0.000000e+00 : f32
    %10 = vector.broadcast %cst_7 : f32 to vector<128x128xf32>
    %11 = arith.maximumf %9, %10 : vector<128x128xf32>
    %cst_8 = arith.constant dense<0.000000e+00> : vector<128xf32>
    %12 = vector.multi_reduction <add>, %11, %cst_8 [1] : vector<128x128xf32> to vector<128xf32>
    %13 = vector.shape_cast %12 : vector<128xf32> to vector<128x1xf32>
    %c1 = arith.constant 1 : index
    %c0_9 = arith.constant 0 : index
    %c0_10 = arith.constant 0 : index
    %14 = vector.load %arg2[%c1, %c0_9, %c0_10] : memref<8x4x128xbf16, #tpu.memory_space<vmem>>, vector<1x4x128xbf16>
    %15 = vector.shape_cast %14 : vector<1x4x128xbf16> to vector<4x128xbf16>
    %cst_11 = arith.constant dense<0.000000e+00> : vector<128x128xf32>
    %16 = tpu.matmul %3, %15, %cst_11 {dimension_numbers = #tpu.dot_dimension_numbers<[1], [0], [0], [1], [0, 0, 1, 1], [], []>} : vector<128x4xbf16>, vector<4x128xbf16>, vector<128x128xf32> -> vector<128x128xf32>
    %17 = vector.broadcast %4 : vector<128x1xf32> to vector<128x128xf32>
    %18 = arith.addf %16, %17 : vector<128x128xf32>
    %cst_12 = arith.constant 0.000000e+00 : f32
    %19 = vector.broadcast %cst_12 : f32 to vector<128x128xf32>
    %20 = arith.maximumf %18, %19 : vector<128x128xf32>
    %cst_13 = arith.constant dense<0.000000e+00> : vector<128xf32>
    %21 = vector.multi_reduction <add>, %20, %cst_13 [1] : vector<128x128xf32> to vector<128xf32>
    %22 = vector.shape_cast %21 : vector<128xf32> to vector<128x1xf32>
    %c2 = arith.constant 2 : index
    %c0_14 = arith.constant 0 : index
    %c0_15 = arith.constant 0 : index
    %23 = vector.load %arg2[%c2, %c0_14, %c0_15] : memref<8x4x128xbf16, #tpu.memory_space<vmem>>, vector<1x4x128xbf16>
    %24 = vector.shape_cast %23 : vector<1x4x128xbf16> to vector<4x128xbf16>
    %cst_16 = arith.constant dense<0.000000e+00> : vector<128x128xf32>
    %25 = tpu.matmul %3, %24, %cst_16 {dimension_numbers = #tpu.dot_dimension_numbers<[1], [0], [0], [1], [0, 0, 1, 1], [], []>} : vector<128x4xbf16>, vector<4x128xbf16>, vector<128x128xf32> -> vector<128x128xf32>
    %26 = vector.broadcast %4 : vector<128x1xf32> to vector<128x128xf32>
    %27 = arith.addf %25, %26 : vector<128x128xf32>
    %cst_17 = arith.constant 0.000000e+00 : f32
    %28 = vector.broadcast %cst_17 : f32 to vector<128x128xf32>
    %29 = arith.maximumf %27, %28 : vector<128x128xf32>
    %cst_18 = arith.constant dense<0.000000e+00> : vector<128xf32>
    %30 = vector.multi_reduction <add>, %29, %cst_18 [1] : vector<128x128xf32> to vector<128xf32>
    %31 = vector.shape_cast %30 : vector<128xf32> to vector<128x1xf32>
    %c3 = arith.constant 3 : index
    %c0_19 = arith.constant 0 : index
    %c0_20 = arith.constant 0 : index
    %32 = vector.load %arg2[%c3, %c0_19, %c0_20] : memref<8x4x128xbf16, #tpu.memory_space<vmem>>, vector<1x4x128xbf16>
    %33 = vector.shape_cast %32 : vector<1x4x128xbf16> to vector<4x128xbf16>
    %cst_21 = arith.constant dense<0.000000e+00> : vector<128x128xf32>
    %34 = tpu.matmul %3, %33, %cst_21 {dimension_numbers = #tpu.dot_dimension_numbers<[1], [0], [0], [1], [0, 0, 1, 1], [], []>} : vector<128x4xbf16>, vector<4x128xbf16>, vector<128x128xf32> -> vector<128x128xf32>
    %35 = vector.broadcast %4 : vector<128x1xf32> to vector<128x128xf32>
    %36 = arith.addf %34, %35 : vector<128x128xf32>
    %cst_22 = arith.constant 0.000000e+00 : f32
    %37 = vector.broadcast %cst_22 : f32 to vector<128x128xf32>
    %38 = arith.maximumf %36, %37 : vector<128x128xf32>
    %cst_23 = arith.constant dense<0.000000e+00> : vector<128xf32>
    %39 = vector.multi_reduction <add>, %38, %cst_23 [1] : vector<128x128xf32> to vector<128xf32>
    %40 = vector.shape_cast %39 : vector<128xf32> to vector<128x1xf32>
    %c4 = arith.constant 4 : index
    %c0_24 = arith.constant 0 : index
    %c0_25 = arith.constant 0 : index
    %41 = vector.load %arg2[%c4, %c0_24, %c0_25] : memref<8x4x128xbf16, #tpu.memory_space<vmem>>, vector<1x4x128xbf16>
    %42 = vector.shape_cast %41 : vector<1x4x128xbf16> to vector<4x128xbf16>
    %cst_26 = arith.constant dense<0.000000e+00> : vector<128x128xf32>
    %43 = tpu.matmul %3, %42, %cst_26 {dimension_numbers = #tpu.dot_dimension_numbers<[1], [0], [0], [1], [0, 0, 1, 1], [], []>} : vector<128x4xbf16>, vector<4x128xbf16>, vector<128x128xf32> -> vector<128x128xf32>
    %44 = vector.broadcast %4 : vector<128x1xf32> to vector<128x128xf32>
    %45 = arith.addf %43, %44 : vector<128x128xf32>
    %cst_27 = arith.constant 0.000000e+00 : f32
    %46 = vector.broadcast %cst_27 : f32 to vector<128x128xf32>
    %47 = arith.maximumf %45, %46 : vector<128x128xf32>
    %cst_28 = arith.constant dense<0.000000e+00> : vector<128xf32>
    %48 = vector.multi_reduction <add>, %47, %cst_28 [1] : vector<128x128xf32> to vector<128xf32>
    %49 = vector.shape_cast %48 : vector<128xf32> to vector<128x1xf32>
    %c5 = arith.constant 5 : index
    %c0_29 = arith.constant 0 : index
    %c0_30 = arith.constant 0 : index
    %50 = vector.load %arg2[%c5, %c0_29, %c0_30] : memref<8x4x128xbf16, #tpu.memory_space<vmem>>, vector<1x4x128xbf16>
    %51 = vector.shape_cast %50 : vector<1x4x128xbf16> to vector<4x128xbf16>
    %cst_31 = arith.constant dense<0.000000e+00> : vector<128x128xf32>
    %52 = tpu.matmul %3, %51, %cst_31 {dimension_numbers = #tpu.dot_dimension_numbers<[1], [0], [0], [1], [0, 0, 1, 1], [], []>} : vector<128x4xbf16>, vector<4x128xbf16>, vector<128x128xf32> -> vector<128x128xf32>
    %53 = vector.broadcast %4 : vector<128x1xf32> to vector<128x128xf32>
    %54 = arith.addf %52, %53 : vector<128x128xf32>
    %cst_32 = arith.constant 0.000000e+00 : f32
    %55 = vector.broadcast %cst_32 : f32 to vector<128x128xf32>
    %56 = arith.maximumf %54, %55 : vector<128x128xf32>
    %cst_33 = arith.constant dense<0.000000e+00> : vector<128xf32>
    %57 = vector.multi_reduction <add>, %56, %cst_33 [1] : vector<128x128xf32> to vector<128xf32>
    %58 = vector.shape_cast %57 : vector<128xf32> to vector<128x1xf32>
    %c6 = arith.constant 6 : index
    %c0_34 = arith.constant 0 : index
    %c0_35 = arith.constant 0 : index
    %59 = vector.load %arg2[%c6, %c0_34, %c0_35] : memref<8x4x128xbf16, #tpu.memory_space<vmem>>, vector<1x4x128xbf16>
    %60 = vector.shape_cast %59 : vector<1x4x128xbf16> to vector<4x128xbf16>
    %cst_36 = arith.constant dense<0.000000e+00> : vector<128x128xf32>
    %61 = tpu.matmul %3, %60, %cst_36 {dimension_numbers = #tpu.dot_dimension_numbers<[1], [0], [0], [1], [0, 0, 1, 1], [], []>} : vector<128x4xbf16>, vector<4x128xbf16>, vector<128x128xf32> -> vector<128x128xf32>
    %62 = vector.broadcast %4 : vector<128x1xf32> to vector<128x128xf32>
    %63 = arith.addf %61, %62 : vector<128x128xf32>
    %cst_37 = arith.constant 0.000000e+00 : f32
    %64 = vector.broadcast %cst_37 : f32 to vector<128x128xf32>
    %65 = arith.maximumf %63, %64 : vector<128x128xf32>
    %cst_38 = arith.constant dense<0.000000e+00> : vector<128xf32>
    %66 = vector.multi_reduction <add>, %65, %cst_38 [1] : vector<128x128xf32> to vector<128xf32>
    %67 = vector.shape_cast %66 : vector<128xf32> to vector<128x1xf32>
    %c7 = arith.constant 7 : index
    %c0_39 = arith.constant 0 : index
    %c0_40 = arith.constant 0 : index
    %68 = vector.load %arg2[%c7, %c0_39, %c0_40] : memref<8x4x128xbf16, #tpu.memory_space<vmem>>, vector<1x4x128xbf16>
    %69 = vector.shape_cast %68 : vector<1x4x128xbf16> to vector<4x128xbf16>
    %cst_41 = arith.constant dense<0.000000e+00> : vector<128x128xf32>
    %70 = tpu.matmul %3, %69, %cst_41 {dimension_numbers = #tpu.dot_dimension_numbers<[1], [0], [0], [1], [0, 0, 1, 1], [], []>} : vector<128x4xbf16>, vector<4x128xbf16>, vector<128x128xf32> -> vector<128x128xf32>
    %71 = vector.broadcast %4 : vector<128x1xf32> to vector<128x128xf32>
    %72 = arith.addf %70, %71 : vector<128x128xf32>
    %cst_42 = arith.constant 0.000000e+00 : f32
    %73 = vector.broadcast %cst_42 : f32 to vector<128x128xf32>
    %74 = arith.maximumf %72, %73 : vector<128x128xf32>
    %cst_43 = arith.constant dense<0.000000e+00> : vector<128xf32>
    %75 = vector.multi_reduction <add>, %74, %cst_43 [1] : vector<128x128xf32> to vector<128xf32>
    %76 = vector.shape_cast %75 : vector<128xf32> to vector<128x1xf32>
    %c0_44 = arith.constant 0 : index
    %c0_45 = arith.constant 0 : index
    %77 = vector.load %arg9[%c0_44, %c0_45] : memref<128x8xf32, #tpu.memory_space<vmem>>, vector<128x8xf32>
    %78 = tpu.concatenate %13, %22, %31, %40, %49, %58, %67, %76 in 1 : vector<128x1xf32>, vector<128x1xf32>, vector<128x1xf32>, vector<128x1xf32>, vector<128x1xf32>, vector<128x1xf32>, vector<128x1xf32>, vector<128x1xf32> -> vector<128x8xf32>
    %79 = arith.addf %77, %78 : vector<128x8xf32>
    %c0_46 = arith.constant 0 : index
    %c0_47 = arith.constant 0 : index
    %80 = vector.load %arg9[%c0_46, %c0_47] : memref<128x8xf32, #tpu.memory_space<vmem>>, vector<128x8xf32>
    tpu.vector_store %arg9[%c0_46, %c0_47], %79 {strides = array<i32>} : memref<128x8xf32, #tpu.memory_space<vmem>>, vector<128x8xf32>,
    %c1_i32 = arith.constant 1 : i32
    %81 = arith.cmpi eq, %arg1, %c1_i32 : i32
    %82 = arith.extui %81 : i1 to i32
    %c0_i32_48 = arith.constant 0 : i32
    %83 = arith.cmpi ne, %82, %c0_i32_48 : i32
    scf.if %83 {
      %c0_49 = arith.constant 0 : index
      %c0_50 = arith.constant 0 : index
      %84 = vector.load %arg9[%c0_49, %c0_50] : memref<128x8xf32, #tpu.memory_space<vmem>>, vector<128x8xf32>
      %85 = tpu.transpose %84, [1, 0] : vector<128x8xf32> -> vector<8x128xf32>
      %cst_51 = arith.constant 3.906250e-03 : f32
      %86 = vector.broadcast %cst_51 : f32 to vector<8x128xf32>
      %87 = arith.mulf %85, %86 : vector<8x128xf32>
      %88 = arith.mulf %87, %87 : vector<8x128xf32>
      %cst_52 = arith.constant dense<0.000000e+00> : vector<8xf32>
      %89 = vector.multi_reduction <add>, %88, %cst_52 [1] : vector<8x128xf32> to vector<8xf32>
      %90 = vector.shape_cast %89 : vector<8xf32> to vector<8x1xf32>
      %91 = math.sqrt %90 : vector<8x1xf32>
      %c0_53 = arith.constant 0 : index
      %92 = memref.load %arg7[%c0_53] : memref<8xf32, #tpu.memory_space<smem>>
      %c1_54 = arith.constant 1 : index
      %93 = memref.load %arg7[%c1_54] : memref<8xf32, #tpu.memory_space<smem>>
      %c2_55 = arith.constant 2 : index
      %94 = memref.load %arg7[%c2_55] : memref<8xf32, #tpu.memory_space<smem>>
      %95 = vector.broadcast %92 : f32 to vector<8x1xf32>
      %96 = arith.subf %91, %95 : vector<8x1xf32>
      %97 = vector.broadcast %93 : f32 to vector<8x1xf32>
      %98 = arith.mulf %96, %97 : vector<8x1xf32>
      %99 = arith.mulf %98, %98 : vector<8x1xf32>
      %c3_56 = arith.constant 3 : index
      %100 = memref.load %arg7[%c3_56] : memref<8xf32, #tpu.memory_space<smem>>
      %101 = vector.broadcast %100 : f32 to vector<8x1xf32>
      %102 = arith.mulf %101, %98 : vector<8x1xf32>
      %103 = arith.mulf %98, %99 : vector<8x1xf32>
      %c4_57 = arith.constant 4 : index
      %104 = memref.load %arg7[%c4_57] : memref<8xf32, #tpu.memory_space<smem>>
      %105 = vector.broadcast %104 : f32 to vector<8x1xf32>
      %106 = arith.mulf %105, %103 : vector<8x1xf32>
      %107 = arith.addf %102, %106 : vector<8x1xf32>
      %108 = arith.mulf %103, %99 : vector<8x1xf32>
      %c5_58 = arith.constant 5 : index
      %109 = memref.load %arg7[%c5_58] : memref<8xf32, #tpu.memory_space<smem>>
      %110 = vector.broadcast %109 : f32 to vector<8x1xf32>
      %111 = arith.mulf %110, %108 : vector<8x1xf32>
      %112 = arith.addf %107, %111 : vector<8x1xf32>
      %113 = arith.mulf %108, %99 : vector<8x1xf32>
      %c6_59 = arith.constant 6 : index
      %114 = memref.load %arg7[%c6_59] : memref<8xf32, #tpu.memory_space<smem>>
      %115 = vector.broadcast %114 : f32 to vector<8x1xf32>
      %116 = arith.mulf %115, %113 : vector<8x1xf32>
      %117 = arith.addf %112, %116 : vector<8x1xf32>
      %118 = arith.mulf %113, %99 : vector<8x1xf32>
      %c7_60 = arith.constant 7 : index
      %119 = memref.load %arg7[%c7_60] : memref<8xf32, #tpu.memory_space<smem>>
      %120 = vector.broadcast %119 : f32 to vector<8x1xf32>
      %121 = arith.mulf %120, %118 : vector<8x1xf32>
      %122 = arith.addf %117, %121 : vector<8x1xf32>
      %123 = vector.broadcast %94 : f32 to vector<8x1xf32>
      %124 = arith.subf %122, %123 : vector<8x1xf32>
      %c0_61 = arith.constant 0 : index
      %c0_62 = arith.constant 0 : index
      %125 = vector.load %arg5[%c0_61, %c0_62] : memref<1x128xf32, #tpu.memory_space<vmem>>, vector<1x128xf32>
      %126 = vector.broadcast %125 : vector<1x128xf32> to vector<8x128xf32>
      %127 = arith.mulf %87, %126 : vector<8x128xf32>
      %c0_63 = arith.constant 0 : index
      %c0_64 = arith.constant 0 : index
      %128 = vector.load %arg6[%c0_63, %c0_64] : memref<1x128xf32, #tpu.memory_space<vmem>>, vector<1x128xf32>
      %129 = vector.broadcast %128 : vector<1x128xf32> to vector<8x128xf32>
      %130 = arith.addf %127, %129 : vector<8x128xf32>
      %131 = arith.mulf %130, %130 : vector<8x128xf32>
      %cst_65 = arith.constant dense<0.000000e+00> : vector<8xf32>
      %132 = vector.multi_reduction <add>, %131, %cst_65 [1] : vector<8x128xf32> to vector<8xf32>
      %133 = vector.shape_cast %132 : vector<8xf32> to vector<8x1xf32>
      %cst_66 = arith.constant 1.000000e-24 : f32
      %134 = vector.broadcast %cst_66 : f32 to vector<8x1xf32>
      %135 = arith.maximumf %133, %134 : vector<8x1xf32>
      %136 = math.rsqrt %135 : vector<8x1xf32>
      %137 = arith.mulf %91, %136 : vector<8x1xf32>
      %138 = vector.broadcast %137 : vector<8x1xf32> to vector<8x128xf32>
      %139 = arith.mulf %130, %138 : vector<8x128xf32>
      %140 = tpu.iota {dimensions = array<i32: 1>} : vector<8x128xi32>
      %c32_i32 = arith.constant 32 : i32
      %141 = vector.broadcast %c32_i32 : i32 to vector<8x128xi32>
      %142 = arith.cmpi eq, %140, %141 : vector<8x128xi32>
      %143 = vector.shape_cast %124 : vector<8x1xf32> to vector<8x1xf32>
      %144 = vector.broadcast %143 : vector<8x1xf32> to vector<8x128xf32>
      %145 = arith.select %142, %144, %139 : vector<8x128xi1>, vector<8x128xf32>
      %c0_67 = arith.constant 0 : index
      %c0_68 = arith.constant 0 : index
      %146 = vector.load %arg8[%c0_67, %c0_68] : memref<8x128xf32, #tpu.memory_space<vmem>>, vector<8x128xf32>
      tpu.vector_store %arg8[%c0_67, %c0_68], %145 {strides = array<i32>} : memref<8x128xf32, #tpu.memory_space<vmem>>, vector<8x128xf32>,
    } else {
    }
    return
  }
  func.func @transform_0(%arg0: i32, %arg1: i32) -> (i32, i32, i32) {
    %c0_i32 = arith.constant 0 : i32
    %c0_i32_0 = arith.constant 0 : i32
    return %arg0, %c0_i32, %arg1 : i32, i32, i32
  }
  func.func @transform_1(%arg0: i32, %arg1: i32) -> (i32, i32) {
    %c0_i32 = arith.constant 0 : i32
    %c0_i32_0 = arith.constant 0 : i32
    %c0_i32_1 = arith.constant 0 : i32
    return %c0_i32, %c0_i32_0 : i32, i32
  }
  func.func @transform_2(%arg0: i32, %arg1: i32) -> (i32, i32) {
    %c0_i32 = arith.constant 0 : i32
    %c0_i32_0 = arith.constant 0 : i32
    %c0_i32_1 = arith.constant 0 : i32
    return %c0_i32, %c0_i32_0 : i32, i32
  }
  func.func @transform_3(%arg0: i32, %arg1: i32) -> (i32, i32) {
    %c0_i32 = arith.constant 0 : i32
    %c0_i32_0 = arith.constant 0 : i32
    %c0_i32_1 = arith.constant 0 : i32
    return %c0_i32, %c0_i32_0 : i32, i32
  }
  func.func @transform_4(%arg0: i32, %arg1: i32) -> (i32, i32) {
    %c0_i32 = arith.constant 0 : i32
    %c0_i32_0 = arith.constant 0 : i32
    %c0_i32_1 = arith.constant 0 : i32
    return %c0_i32, %c0_i32_0 : i32, i32
  }
  func.func @transform_5(%arg0: i32, %arg1: i32) -> i32 {
    %c0_i32 = arith.constant 0 : i32
    %c0_i32_0 = arith.constant 0 : i32
    return %c0_i32 : i32
  }
  func.func @transform_6(%arg0: i32, %arg1: i32) -> (i32, i32) {
    %c0_i32 = arith.constant 0 : i32
    %c0_i32_0 = arith.constant 0 : i32
    return %arg0, %c0_i32 : i32, i32
  }
}

</mosaic_0001>

<llo_original>
// kernel: tpu_custom_call.1
$region0: #{tpu_custom_call.1}
  #allocation0 [shape = 'u32[]', space=smem, size = 0x4, offset = 0x4, fixed_abs, tag = 'smem constant byte address 0x4 - core index']
  #allocation1 [shape = 'u32[72,128]{1,0:T(1,128)}', space=vmem, size = 0x9000, scoped, tag = 'internal scratch']
  #allocation2 [shape = 'f32[128,8]{1,0:T(8,128)}', space=vmem, size = 0x10000, scoped, tag = 'scratch operand']
  %s0 = inlined_call_operand.vmem [shape: bf16[8,4,256], index: 0, kind: input, shape index: {}]
  %s1 = inlined_call_operand.vmem [shape: bf16[128,4], index: 1, kind: input, shape index: {}]
  %s2 = inlined_call_operand.vmem [shape: f32[128,1], index: 2, kind: input, shape index: {}]
  %s3 = inlined_call_operand.vmem [shape: f32[1,128], index: 3, kind: input, shape index: {}]
  %s4 = inlined_call_operand.vmem [shape: f32[1,128], index: 4, kind: input, shape index: {}]
  %s5 = inlined_call_operand.vmem [shape: f32[8], index: 5, kind: input, shape index: {}]
  %s6 = inlined_call_operand.hbm [shape: f32[8,128], index: 6, kind: output, shape index: {}]
  %s7 = sld [smem:[#allocation0]]
  $region110: #{tpu_custom_call.1} parent=0
    _
  %s9 = ssub.s32 1, %s7
  %s10 = scalar_select 0, %s9, %s7
  $region1: #{tpu_custom_call.1} parent=0
    #allocation3 [shape = 'u8[16384]{0}', space=vmem, size = 0x4000, scoped, tag = 'input window, operand 0']
    #allocation4 [shape = 'u8[512]{0}', space=smem, size = 0x200, scoped, tag = 'input window, operand 5, single buffered']
    #allocation5 [shape = 's32[2]{0}', space=sflag, size = 0x8, scoped, tag = 'scoped memory for tpu_custom_call.1']
    #allocation6 [shape = 's32[2]{0}', space=sflag, size = 0x8, scoped, tag = 'scoped memory for tpu_custom_call.1']
    #allocation7 [shape = 'u8[4096]{0}', space=vmem, size = 0x1000, scoped, tag = 'output window, operand 0, single buffered']
    %11 = vsyncpa [#allocation6], 0
    %12 = vsyncpa [#allocation5], 0
    loop: start=0, step=1, limit=4
    $region2: #{tpu_custom_call.1} parent=1 // loop_pre_header
      _
    $region3: #{tpu_custom_call.1} parent=1 // loop_header
      %s14 = sphi 0, %s18
      %p15 = scmp.ge.s32.totalorder %s14, 4
      %s21 = sphi 0, %s33
      %s22 = sphi 0, %s29
      %s23 = sphi 0, %s21
      %s24 = sphi 0, %s22
      %s25 = sphi 0, %s23
      %s26 = sphi 0, %s24
      %s38 = sphi 0, %s40
      %s41 = sphi 0, %s38
      %s42 = sphi 0, %s41
      %s58 = sphi 0, %s42
      %s62 = sphi 0, %s62
      %s64 = sphi 0, %s62
      %s65 = sphi 0, %s64
      %s79 = sphi 0, %s65
      %s83 = sphi 0, %s83
      %s85 = sphi 0, %s83
      %s86 = sphi 0, %s85
      %s100 = sphi 0, %s86
      %s104 = sphi 0, %s104
      %s106 = sphi 0, %s104
      %s107 = sphi 0, %s106
      %s121 = sphi 0, %s107
      %s125 = sphi 0, %s125
      %s127 = sphi 0, %s125
      %s128 = sphi 0, %s127
      %s142 = sphi 0, %s128
      %s146 = sphi 0, %s146
      %s148 = sphi 0, %s146
      %s149 = sphi 0, %s148
      %s163 = sphi 0, %s149
      %s169 = sphi 0, %s171
      %s172 = sphi 0, %s169
      %s173 = sphi 0, %s172
      %s189 = sphi 0, %s173
    $region4: #{tpu_custom_call.1} parent=1 // loop_header_branch
      %17 = sbr.rel (%p15) target = $region8
    $region5: #{tpu_custom_call.1} parent=1 // loop_body
      %s19 = ssub.s32 %s14, 1
      %s20 = ssub.s32 %s14, 2
      %s27 = sadd.s32 1, %s22
      %p28 = scmp.ge.s32.totalorder %s27, 2
      %s29 = scalar_select %p28, 0, %s27
      %s30 = sadd.s32 1, %s21
      %s31 = scalar_select %p28, %s30, %s21
      %p32 = scmp.ge.s32.totalorder %s31, 1
      %s33 = scalar_select %p32, 0, %s31
      %s34 = ssub.s32 %s21, %s33
      %s35 = ssub.s32 %s22, %s29
      %s36 = sor.u32 %s34, %s35
      %p37 = scmp.eq.s32.totalorder %s36, 0
      %s39 = sadd.s32 %s38, 1
      %s40 = scalar_select %p37, %s38, %s39
      %p43 = pneg %p37
      %p44 = scmp.eq.s32.totalorder %s14, 1
      %p45 = por %p43, %p44
      %p46 = scmp.ne.s32.totalorder %s38, %s41
      %p47 = scmp.eq.s32.totalorder %s14, 0
      %p48 = por %p46, %p47
      %p49 = scmp.ne.s32.totalorder %s38, %s41
      %p50 = scmp.eq.s32.totalorder %s19, 1
      %p51 = por %p49, %p50
      %p52 = scmp.ne.s32.totalorder %s41, %s42
      %p53 = scmp.eq.s32.totalorder %s19, 0
      %p54 = por %p52, %p53
      %p55 = scmp.ne.s32.totalorder %s41, %s42
      %p56 = scmp.eq.s32.totalorder %s20, 1
      %p57 = por %p55, %p56
      %p59 = scmp.ne.s32.totalorder %s42, %s58
      %p60 = scmp.eq.s32.totalorder %s20, 0
      %p61 = por %p59, %p60
      %s63 = sadd.s32 %s62, 1
      %p66 = scmp.eq.s32.totalorder %s14, 1
      %p67 = scmp.ne.s32.totalorder %s62, %s64
      %p68 = scmp.eq.s32.totalorder %s14, 0
      %p69 = por %p67, %p68
      %p70 = scmp.ne.s32.totalorder %s62, %s64
      %p71 = scmp.eq.s32.totalorder %s19, 1
      %p72 = por %p70, %p71
      %p73 = scmp.ne.s32.totalorder %s64, %s65
      %p74 = scmp.eq.s32.totalorder %s19, 0
      %p75 = por %p73, %p74
      %p76 = scmp.ne.s32.totalorder %s64, %s65
      %p77 = scmp.eq.s32.totalorder %s20, 1
      %p78 = por %p76, %p77
      %p80 = scmp.ne.s32.totalorder %s65, %s79
      %p81 = scmp.eq.s32.totalorder %s20, 0
      %p82 = por %p80, %p81
      %s84 = sadd.s32 %s83, 1
      %p87 = scmp.eq.s32.totalorder %s14, 1
      %p88 = scmp.ne.s32.totalorder %s83, %s85
      %p89 = scmp.eq.s32.totalorder %s14, 0
      %p90 = por %p88, %p89
      %p91 = scmp.ne.s32.totalorder %s83, %s85
      %p92 = scmp.eq.s32.totalorder %s19, 1
      %p93 = por %p91, %p92
      %p94 = scmp.ne.s32.totalorder %s85, %s86
      %p95 = scmp.eq.s32.totalorder %s19, 0
      %p96 = por %p94, %p95
      %p97 = scmp.ne.s32.totalorder %s85, %s86
      %p98 = scmp.eq.s32.totalorder %s20, 1
      %p99 = por %p97, %p98
      %p101 = scmp.ne.s32.totalorder %s86, %s100
      %p102 = scmp.eq.s32.totalorder %s20, 0
      %p103 = por %p101, %p102
      %s105 = sadd.s32 %s104, 1
      %p108 = scmp.eq.s32.totalorder %s14, 1
      %p109 = scmp.ne.s32.totalorder %s104, %s106
      %p110 = scmp.eq.s32.totalorder %s14, 0
      %p111 = por %p109, %p110
      %p112 = scmp.ne.s32.totalorder %s104, %s106
      %p113 = scmp.eq.s32.totalorder %s19, 1
      %p114 = por %p112, %p113
      %p115 = scmp.ne.s32.totalorder %s106, %s107
      %p116 = scmp.eq.s32.totalorder %s19, 0
      %p117 = por %p115, %p116
      %p118 = scmp.ne.s32.totalorder %s106, %s107
      %p119 = scmp.eq.s32.totalorder %s20, 1
      %p120 = por %p118, %p119
      %p122 = scmp.ne.s32.totalorder %s107, %s121
      %p123 = scmp.eq.s32.totalorder %s20, 0
      %p124 = por %p122, %p123
      %s126 = sadd.s32 %s125, 1
      %p129 = scmp.eq.s32.totalorder %s14, 1
      %p130 = scmp.ne.s32.totalorder %s125, %s127
      %p131 = scmp.eq.s32.totalorder %s14, 0
      %p132 = por %p130, %p131
      %p133 = scmp.ne.s32.totalorder %s125, %s127
      %p134 = scmp.eq.s32.totalorder %s19, 1
      %p135 = por %p133, %p134
      %p136 = scmp.ne.s32.totalorder %s127, %s128
      %p137 = scmp.eq.s32.totalorder %s19, 0
      %p138 = por %p136, %p137
      %p139 = scmp.ne.s32.totalorder %s127, %s128
      %p140 = scmp.eq.s32.totalorder %s20, 1
      %p141 = por %p139, %p140
      %p143 = scmp.ne.s32.totalorder %s128, %s142
      %p144 = scmp.eq.s32.totalorder %s20, 0
      %p145 = por %p143, %p144
      %s147 = sadd.s32 %s146, 1
      %p150 = scmp.eq.s32.totalorder %s14, 1
      %p151 = scmp.ne.s32.totalorder %s146, %s148
      %p152 = scmp.eq.s32.totalorder %s14, 0
      %p153 = por %p151, %p152
      %p154 = scmp.ne.s32.totalorder %s146, %s148
      %p155 = scmp.eq.s32.totalorder %s19, 1
      %p156 = por %p154, %p155
      %p157 = scmp.ne.s32.totalorder %s148, %s149
      %p158 = scmp.eq.s32.totalorder %s19, 0
      %p159 = por %p157, %p158
      %p160 = scmp.ne.s32.totalorder %s148, %s149
      %p161 = scmp.eq.s32.totalorder %s20, 1
      %p162 = por %p160, %p161
      %p164 = scmp.ne.s32.totalorder %s149, %s163
      %p165 = scmp.eq.s32.totalorder %s20, 0
      %p166 = por %p164, %p165
      %s167 = ssub.s32 %s21, %s33
      %p168 = scmp.eq.s32.totalorder %s167, 0
      %s170 = sadd.s32 %s169, 1
      %s171 = scalar_select %p168, %s169, %s170
      %p174 = pneg %p168
      %p175 = scmp.eq.s32.totalorder %s14, 1
      %p176 = por %p174, %p175
      %p177 = scmp.ne.s32.totalorder %s169, %s172
      %p178 = scmp.eq.s32.totalorder %s14, 0
      %p179 = por %p177, %p178
      %p180 = scmp.ne.s32.totalorder %s169, %s172
      %p181 = scmp.eq.s32.totalorder %s19, 1
      %p182 = por %p180, %p181
      %p183 = scmp.ne.s32.totalorder %s172, %s173
      %p184 = scmp.eq.s32.totalorder %s19, 0
      %p185 = por %p183, %p184
      %p186 = scmp.ne.s32.totalorder %s172, %s173
      %p187 = scmp.eq.s32.totalorder %s20, 1
      %p188 = por %p186, %p187
      %p190 = scmp.ne.s32.totalorder %s173, %s189
      %p191 = scmp.eq.s32.totalorder %s20, 0
      %p192 = por %p190, %p191
      %p193 = scmp.le.s32.totalorder 1, %s14
      %p194 = scmp.lt.s32.totalorder %s14, 3
      %p195 = pnand %p193, %p194
      %p196 = pneg %p195
      // Predicated region
      $region9: #{tpu_custom_call.1} parent=5 // pred_check
        _
      $region10: #{tpu_custom_call.1} parent=5 // pred_check_branch
        %198 = sbr.rel (%p195) target = $region12
      $region11: #{tpu_custom_call.1} parent=5 // pred_region
        %s199 = ssub.s32 %s14, 1
        // Predicated region
        $region13: #{tpu_custom_call.1} parent=11 // pred_check
          %p200 = pneg %p75
        $region14: #{tpu_custom_call.1} parent=11 // pred_check_branch
          %202 = sbr.rel (%p200) target = $region16
        $region15: #{tpu_custom_call.1} parent=11 // pred_region
          _
        $region16: #{tpu_custom_call.1} parent=11 // pred_fallthru
          _
        // Predicated region
        $region17: #{tpu_custom_call.1} parent=11 // pred_check
          %p203 = pneg %p96
        $region18: #{tpu_custom_call.1} parent=11 // pred_check_branch
          %205 = sbr.rel (%p203) target = $region20
        $region19: #{tpu_custom_call.1} parent=11 // pred_region
          _
        $region20: #{tpu_custom_call.1} parent=11 // pred_fallthru
          _
        // Predicated region
        $region21: #{tpu_custom_call.1} parent=11 // pred_check
          %p206 = pneg %p117
        $region22: #{tpu_custom_call.1} parent=11 // pred_check_branch
          %208 = sbr.rel (%p206) target = $region24
        $region23: #{tpu_custom_call.1} parent=11 // pred_region
          _
        $region24: #{tpu_custom_call.1} parent=11 // pred_fallthru
          _
        // Predicated region
        $region25: #{tpu_custom_call.1} parent=11 // pred_check
          %p209 = pneg %p138
        $region26: #{tpu_custom_call.1} parent=11 // pred_check_branch
          %211 = sbr.rel (%p209) target = $region28
        $region27: #{tpu_custom_call.1} parent=11 // pred_region
          _
        $region28: #{tpu_custom_call.1} parent=11 // pred_fallthru
          _
        // Predicated region
        $region29: #{tpu_custom_call.1} parent=11 // pred_check
          %p212 = pneg %p159
        $region30: #{tpu_custom_call.1} parent=11 // pred_check_branch
          %214 = sbr.rel (%p212) target = $region32
        $region31: #{tpu_custom_call.1} parent=11 // pred_region
          %216 = vsyncadd [#allocation6], 0
          %s218 = sshll.u32 %s5, 4
          %s219 = int_to_ptr.vmem [resolvable:$true] %s218
          %221 = dma.vmem_to_smem %s219, 16, [#allocation4], [#allocation6]
        $region32: #{tpu_custom_call.1} parent=11 // pred_fallthru
          _
      $region12: #{tpu_custom_call.1} parent=5 // pred_fallthru
        _
      %p222 = scmp.lt.s32.totalorder %s14, 2
      // Predicated region
      $region33: #{tpu_custom_call.1} parent=5 // pred_check
        %p223 = pneg %p222
      $region34: #{tpu_custom_call.1} parent=5 // pred_check_branch
        %225 = sbr.rel (%p223) target = $region36
      $region35: #{tpu_custom_call.1} parent=5 // pred_region
        // Predicated region
        $region37: #{tpu_custom_call.1} parent=35 // pred_check
          %p226 = pneg %p48
        $region38: #{tpu_custom_call.1} parent=35 // pred_check_branch
          %228 = sbr.rel (%p226) target = $region40
        $region39: #{tpu_custom_call.1} parent=35 // pred_region
          %s229 = sand.u32 %s38, 1
          %s230 = sand.u32 %s38, 1
          %s231 = smul.addr %s230, 16
          %s232 = scalar_lea.vmem [#allocation3], %s231
          %s233 = smul.u32 8, %s21
          %s234 = smul.addr %s233, 2
          %s235 = sadd.s32 %s22, %s234
          %s236 = smul.addr %s235, 2
          %s237 = scalar_lea.vmem %s0, %s236
          // Predicated region
          $region41: #{tpu_custom_call.1} parent=39 // pred_check
            _
          $region42: #{tpu_custom_call.1} parent=39 // pred_check_branch
            %239 = sbr.rel (0) target = $region44
          $region43: #{tpu_custom_call.1} parent=39 // pred_region
            // Predicated region
            $region45: #{tpu_custom_call.1} parent=43 // pred_check
              _
            $region46: #{tpu_custom_call.1} parent=43 // pred_check_branch
              %241 = sbr.rel target = $region48
            $region47: #{tpu_custom_call.1} parent=43 // pred_region
              // Predicated region
              $region60: #{tpu_custom_call.1} parent=47 // pred_check
                _
              $region61: #{tpu_custom_call.1} parent=47 // pred_check_branch
                %271 = sbr.rel (0) target = $region63
              $region62: #{tpu_custom_call.1} parent=47 // pred_region
                loop: start=0, step=1, limit=1
                $region64: #{tpu_custom_call.1} parent=62 // loop_pre_header
                  _
                $region65: #{tpu_custom_call.1} parent=62 // loop_header
                  %s273 = sphi 0, %s277
                  %p274 = scmp.ge.s32.totalorder %s273, 1
                  %s278 = sphi %s237, %s237
                  %s279 = sphi %s232, %s232
                $region66: #{tpu_custom_call.1} parent=62 // loop_header_branch
                  %276 = sbr.rel (%p274) target = $region70
                $region67: #{tpu_custom_call.1} parent=62 // loop_body
                  _
                $region68: #{tpu_custom_call.1} parent=62 // loop_footer
                  %s277 = sadd.s32 1, %s273
                $region69: #{tpu_custom_call.1} parent=62 // loop_footer_branch
                  %272 = sbr.rel target = $region65
                $region70: #{tpu_custom_call.1} parent=62 // loop_exit
                  _
                %s281 = ssub.s32 4, 1
                loop: start=0, step=1, limit=1
                $region71: #{tpu_custom_call.1} parent=62 // loop_pre_header
                  _
                $region72: #{tpu_custom_call.1} parent=62 // loop_header
                  %s283 = sphi 0, %s287
                  %p284 = scmp.ge.s32.totalorder %s283, 1
                  %s288 = sphi %s237, %s237
                  %s289 = sphi %s232, %s232
                $region73: #{tpu_custom_call.1} parent=62 // loop_header_branch
                  %286 = sbr.rel (%p284) target = $region77
                $region74: #{tpu_custom_call.1} parent=62 // loop_body
                  %v290 = vld [vmem:[%s288] sm:%s281]
                  %291 = vst [vmem:[%s289] sm:%s281] %v290
                  %v292 = vld [vmem:[%s288 + $0x4] sm:%s281]
                  %293 = vst [vmem:[%s289 + $0x2] sm:%s281] %v292
                  %v294 = vld [vmem:[%s288 + $0x8] sm:%s281]
                  %295 = vst [vmem:[%s289 + $0x4] sm:%s281] %v294
                  %v296 = vld [vmem:[%s288 + $0xc] sm:%s281]
                  %297 = vst [vmem:[%s289 + $0x6] sm:%s281] %v296
                  %v298 = vld [vmem:[%s288 + $0x10] sm:%s281]
                  %299 = vst [vmem:[%s289 + $0x8] sm:%s281] %v298
                  %v300 = vld [vmem:[%s288 + $0x14] sm:%s281]
                  %301 = vst [vmem:[%s289 + $0xa] sm:%s281] %v300
                  %v302 = vld [vmem:[%s288 + $0x18] sm:%s281]
                  %303 = vst [vmem:[%s289 + $0xc] sm:%s281] %v302
                  %v304 = vld [vmem:[%s288 + $0x1c] sm:%s281]
                  %305 = vst [vmem:[%s289 + $0xe] sm:%s281] %v304
                $region75: #{tpu_custom_call.1} parent=62 // loop_footer
                  %s287 = sadd.s32 1, %s283
                $region76: #{tpu_custom_call.1} parent=62 // loop_footer_branch
                  %282 = sbr.rel target = $region72
                $region77: #{tpu_custom_call.1} parent=62 // loop_exit
                  _
              $region63: #{tpu_custom_call.1} parent=47 // pred_fallthru
                _
            $region48: #{tpu_custom_call.1} parent=43 // pred_fallthru
              _
            // Predicated region
            $region49: #{tpu_custom_call.1} parent=43 // pred_check
              _
            $region50: #{tpu_custom_call.1} parent=43 // pred_check_branch
              %243 = sbr.rel (0) target = $region52
            $region51: #{tpu_custom_call.1} parent=43 // pred_region
              %s245 = ssub.s32 4, 1
              loop: start=0, step=1, limit=1
              $region53: #{tpu_custom_call.1} parent=51 // loop_pre_header
                _
              $region54: #{tpu_custom_call.1} parent=51 // loop_header
                %s247 = sphi 0, %s251
                %p248 = scmp.ge.s32.totalorder %s247, 1
                %s252 = sphi %s237, %s237
                %s253 = sphi %s232, %s232
              $region55: #{tpu_custom_call.1} parent=51 // loop_header_branch
                %250 = sbr.rel (%p248) target = $region59
              $region56: #{tpu_custom_call.1} parent=51 // loop_body
                %v254 = vld [vmem:[%s252] sm:%s245]
                %255 = vst [vmem:[%s253] sm:%s245] %v254
                %v256 = vld [vmem:[%s252 + $0x4] sm:%s245]
                %257 = vst [vmem:[%s253 + $0x2] sm:%s245] %v256
                %v258 = vld [vmem:[%s252 + $0x8] sm:%s245]
                %259 = vst [vmem:[%s253 + $0x4] sm:%s245] %v258
                %v260 = vld [vmem:[%s252 + $0xc] sm:%s245]
                %261 = vst [vmem:[%s253 + $0x6] sm:%s245] %v260
                %v262 = vld [vmem:[%s252 + $0x10] sm:%s245]
                %263 = vst [vmem:[%s253 + $0x8] sm:%s245] %v262
                %v264 = vld [vmem:[%s252 + $0x14] sm:%s245]
                %265 = vst [vmem:[%s253 + $0xa] sm:%s245] %v264
                %v266 = vld [vmem:[%s252 + $0x18] sm:%s245]
                %267 = vst [vmem:[%s253 + $0xc] sm:%s245] %v266
                %v268 = vld [vmem:[%s252 + $0x1c] sm:%s245]
                %269 = vst [vmem:[%s253 + $0xe] sm:%s245] %v268
              $region57: #{tpu_custom_call.1} parent=51 // loop_footer
                %s251 = sadd.s32 1, %s247
              $region58: #{tpu_custom_call.1} parent=51 // loop_footer_branch
                %246 = sbr.rel target = $region54
              $region59: #{tpu_custom_call.1} parent=51 // loop_exit
                _
            $region52: #{tpu_custom_call.1} parent=43 // pred_fallthru
              _
          $region44: #{tpu_custom_call.1} parent=39 // pred_fallthru
            _
          %306 = vnop
        $region40: #{tpu_custom_call.1} parent=35 // pred_fallthru
          _
      $region36: #{tpu_custom_call.1} parent=5 // pred_fallthru
        _
      %p307 = scmp.le.s32.totalorder 1, %s14
      %p308 = scmp.lt.s32.totalorder %s14, 3
      %p309 = pnand %p307, %p308
      %p310 = pneg %p309
      // Predicated region
      $region78: #{tpu_custom_call.1} parent=5 // pred_check
        _
      $region79: #{tpu_custom_call.1} parent=5 // pred_check_branch
        %312 = sbr.rel (%p309) target = $region81
      $region80: #{tpu_custom_call.1} parent=5 // pred_region
        %s313 = ssub.s32 %s14, 1
        %s314 = sand.u32 %s41, 1
        %s315 = sand.u32 %s41, 1
        %s316 = smul.addr %s315, 16
        %s317 = scalar_lea.vmem [#allocation3], %s316
        // Predicated region
        $region82: #{tpu_custom_call.1} parent=80 // pred_check
          %p318 = pneg %p54
        $region83: #{tpu_custom_call.1} parent=80 // pred_check_branch
          %320 = sbr.rel (%p318) target = $region85
        $region84: #{tpu_custom_call.1} parent=80 // pred_region
          _
        $region85: #{tpu_custom_call.1} parent=80 // pred_fallthru
          _
        // Predicated region
        $region86: #{tpu_custom_call.1} parent=80 // pred_check
          %p321 = pneg %p159
        $region87: #{tpu_custom_call.1} parent=80 // pred_check_branch
          %323 = sbr.rel (%p321) target = $region89
        $region88: #{tpu_custom_call.1} parent=80 // pred_region
          %325 = dma.done [#allocation6], 16
        $region89: #{tpu_custom_call.1} parent=80 // pred_fallthru
          _
        %326 = sfence
        %s327 = sand.u32 %s41, 1
        %s328 = sand.u32 %s41, 1
        %s329 = smul.addr %s328, 16
        %s330 = scalar_lea.vmem [#allocation3], %s329
        %p331 = pneg %p54
        %p332 = pneg %p51
        %p333 = pneg %p75
        %p334 = pneg %p72
        %p335 = pneg %p96
        %p336 = pneg %p93
        %p337 = pneg %p117
        %p338 = pneg %p114
        %p339 = pneg %p138
        %p340 = pneg %p135
        %p341 = pneg %p159
        %p342 = pneg %p156
        %p343 = pneg %p185
        %p344 = pneg %p182
        %s345 = smul.u32 8, %s23
        %p347 = scmp.eq.s32.totalorder %s24, 0
        // Predicated region
        $region90: #{tpu_custom_call.1} parent=80 // pred_check
          %p348 = pneg %p347
        $region91: #{tpu_custom_call.1} parent=80 // pred_check_branch
          %350 = sbr.rel (%p348) target = $region93
        $region92: #{tpu_custom_call.1} parent=80 // pred_region
          %vm351 = vcmask 64512
          %352 = vst.msk [vmem:[#allocation2] sm:$0xff] %vm351, 0.0
          %353 = vst.msk [vmem:[#allocation2 + $0x8] sm:$0xff] %vm351, 0.0
          %354 = vst.msk [vmem:[#allocation2 + $0x10] sm:$0xff] %vm351, 0.0
          %355 = vst.msk [vmem:[#allocation2 + $0x18] sm:$0xff] %vm351, 0.0
          %356 = vst.msk [vmem:[#allocation2 + $0x20] sm:$0xff] %vm351, 0.0
          %357 = vst.msk [vmem:[#allocation2 + $0x28] sm:$0xff] %vm351, 0.0
          %358 = vst.msk [vmem:[#allocation2 + $0x30] sm:$0xff] %vm351, 0.0
          %359 = vst.msk [vmem:[#allocation2 + $0x38] sm:$0xff] %vm351, 0.0
          %360 = vst.msk [vmem:[#allocation2 + $0x40] sm:$0xff] %vm351, 0.0
          %361 = vst.msk [vmem:[#allocation2 + $0x48] sm:$0xff] %vm351, 0.0
          %362 = vst.msk [vmem:[#allocation2 + $0x50] sm:$0xff] %vm351, 0.0
          %363 = vst.msk [vmem:[#allocation2 + $0x58] sm:$0xff] %vm351, 0.0
          %364 = vst.msk [vmem:[#allocation2 + $0x60] sm:$0xff] %vm351, 0.0
          %365 = vst.msk [vmem:[#allocation2 + $0x68] sm:$0xff] %vm351, 0.0
          %366 = vst.msk [vmem:[#allocation2 + $0x70] sm:$0xff] %vm351, 0.0
          %367 = vst.msk [vmem:[#allocation2 + $0x78] sm:$0xff] %vm351, 0.0
        $region93: #{tpu_custom_call.1} parent=80 // pred_fallthru
          _
        %v368 = vld [vmem:[%s1] sm:$0xf]
        %v369 = vld [vmem:[%s1 + $0x4] sm:$0xf]
        %v370 = vld [vmem:[%s1 + $0x8] sm:$0xf]
        %v371 = vld [vmem:[%s1 + $0xc] sm:$0xf]
        %v372 = vld [vmem:[%s1 + $0x10] sm:$0xf]
        %v373 = vld [vmem:[%s1 + $0x14] sm:$0xf]
        %v374 = vld [vmem:[%s1 + $0x18] sm:$0xf]
        %v375 = vld [vmem:[%s1 + $0x1c] sm:$0xf]
        %v376 = vld [vmem:[%s1 + $0x20] sm:$0xf]
        %v377 = vld [vmem:[%s1 + $0x24] sm:$0xf]
        %v378 = vld [vmem:[%s1 + $0x28] sm:$0xf]
        %v379 = vld [vmem:[%s1 + $0x2c] sm:$0xf]
        %v380 = vld [vmem:[%s1 + $0x30] sm:$0xf]
        %v381 = vld [vmem:[%s1 + $0x34] sm:$0xf]
        %v382 = vld [vmem:[%s1 + $0x38] sm:$0xf]
        %v383 = vld [vmem:[%s1 + $0x3c] sm:$0xf]
        %v384 = vld [vmem:[%s2] sm:$0xff]
        %v385 = vld [vmem:[%s2 + $0x8] sm:$0xff]
        %v386 = vld [vmem:[%s2 + $0x10] sm:$0xff]
        %v387 = vld [vmem:[%s2 + $0x18] sm:$0xff]
        %v388 = vld [vmem:[%s2 + $0x20] sm:$0xff]
        %v389 = vld [vmem:[%s2 + $0x28] sm:$0xff]
        %v390 = vld [vmem:[%s2 + $0x30] sm:$0xff]
        %v391 = vld [vmem:[%s2 + $0x38] sm:$0xff]
        %v392 = vld [vmem:[%s2 + $0x40] sm:$0xff]
        %v393 = vld [vmem:[%s2 + $0x48] sm:$0xff]
        %v394 = vld [vmem:[%s2 + $0x50] sm:$0xff]
        %v395 = vld [vmem:[%s2 + $0x58] sm:$0xff]
        %v396 = vld [vmem:[%s2 + $0x60] sm:$0xff]
        %v397 = vld [vmem:[%s2 + $0x68] sm:$0xff]
        %v398 = vld [vmem:[%s2 + $0x70] sm:$0xff]
        %v399 = vld [vmem:[%s2 + $0x78] sm:$0xff]
        %v400 = vld [vmem:[%s317] sm:$0x3]
        %402 = vset.pattern.permute.xlu0 0
        %403 = vperm.xlu0 %402, %v384
        %v404 = vpop.permute.xlu0 %403
        %407 = vset.pattern.permute.xlu0 0
        %408 = vperm.xlu0 %407, %v385
        %v409 = vpop.permute.xlu0 %408
        %412 = vset.pattern.permute.xlu0 0
        %413 = vperm.xlu0 %412, %v386
        %v414 = vpop.permute.xlu0 %413
        %417 = vset.pattern.permute.xlu0 0
        %418 = vperm.xlu0 %417, %v387
        %v419 = vpop.permute.xlu0 %418
        %422 = vset.pattern.permute.xlu0 0
        %423 = vperm.xlu0 %422, %v388
        %v424 = vpop.permute.xlu0 %423
        %427 = vset.pattern.permute.xlu0 0
        %428 = vperm.xlu0 %427, %v389
        %v429 = vpop.permute.xlu0 %428
        %432 = vset.pattern.permute.xlu0 0
        %433 = vperm.xlu0 %432, %v390
        %v434 = vpop.permute.xlu0 %433
        %437 = vset.pattern.permute.xlu0 0
        %438 = vperm.xlu0 %437, %v391
        %v439 = vpop.permute.xlu0 %438
        %442 = vset.pattern.permute.xlu0 0
        %443 = vperm.xlu0 %442, %v392
        %v444 = vpop.permute.xlu0 %443
        %447 = vset.pattern.permute.xlu0 0
        %448 = vperm.xlu0 %447, %v393
        %v449 = vpop.permute.xlu0 %448
        %452 = vset.pattern.permute.xlu0 0
        %453 = vperm.xlu0 %452, %v394
        %v454 = vpop.permute.xlu0 %453
        %457 = vset.pattern.permute.xlu0 0
        %458 = vperm.xlu0 %457, %v395
        %v459 = vpop.permute.xlu0 %458
        %462 = vset.pattern.permute.xlu0 0
        %463 = vperm.xlu0 %462, %v396
        %v464 = vpop.permute.xlu0 %463
        %467 = vset.pattern.permute.xlu0 0
        %468 = vperm.xlu0 %467, %v397
        %v469 = vpop.permute.xlu0 %468
        %472 = vset.pattern.permute.xlu0 0
        %473 = vperm.xlu0 %472, %v398
        %v474 = vpop.permute.xlu0 %473
        %477 = vset.pattern.permute.xlu0 0
        %478 = vperm.xlu0 %477, %v399
        %v479 = vpop.permute.xlu0 %478
        %v497 = vunpack.c.l.b16 %v368
        %v498 = vunpack.c.l.b16 %v369
        %v499 = vunpack.c.l.b16 %v370
        %v500 = vunpack.c.l.b16 %v371
        %v501 = vunpack.c.l.b16 %v372
        %v502 = vunpack.c.l.b16 %v373
        %v503 = vunpack.c.l.b16 %v374
        %v504 = vunpack.c.l.b16 %v375
        %v505 = vunpack.c.l.b16 %v376
        %v506 = vunpack.c.l.b16 %v377
        %v507 = vunpack.c.l.b16 %v378
        %v508 = vunpack.c.l.b16 %v379
        %v509 = vunpack.c.l.b16 %v380
        %v510 = vunpack.c.l.b16 %v381
        %v511 = vunpack.c.l.b16 %v382
        %v512 = vunpack.c.l.b16 %v383
        %v513 = vpack.c.b16 %v498, %v497
        %v514 = vpack.c.b16 %v500, %v499
        %v515 = vpack.c.b16 %v502, %v501
        %v516 = vpack.c.b16 %v504, %v503
        %v517 = vpack.c.b16 %v506, %v505
        %v518 = vpack.c.b16 %v508, %v507
        %v519 = vpack.c.b16 %v510, %v509
        %v520 = vpack.c.b16 %v512, %v511
        %vm521 = vcmask 31744
        %v523 = vsel %vm521, %v513, 0
        %v526 = vsel %vm521, %v514, 0
        %v529 = vsel %vm521, %v515, 0
        %v532 = vsel %vm521, %v516, 0
        %v535 = vsel %vm521, %v517, 0
        %v538 = vsel %vm521, %v518, 0
        %v541 = vsel %vm521, %v519, 0
        %v544 = vsel %vm521, %v520, 0
        %vm546 = vcmask 1041408
        %v548 = vsel %vm546, %v400, 0
        %550 = vmatpush.bf16.msra.mxu0 0
        %551 = vmatpush.bf16.msra.mxu0 0
        %552 = vmatpush.bf16.msra.mxu0 0
        %553 = vmatpush.bf16.msra.mxu0 0
        %554 = vmatpush.bf16.msra.mxu0 0
        %555 = vmatpush.bf16.msra.mxu0 0
        %556 = vmatpush.bf16.msra.mxu0 0
        %557 = vmatpush.bf16.msra.mxu0 %v548
        %558 = vmatmul.bf16.gmra.mxu0 %v523
        %v559 = vpop.f32.mrf.mxu0
        %v560 = vadd.f32 %v404, %v559
        %v561 = vpop.f32.mrf.mxu0
        %v562 = vadd.f32 %v409, %v561
        %563 = vmatmul.bf16.gmra.mxu0 %v526
        %v564 = vpop.f32.mrf.mxu0
        %v565 = vadd.f32 %v414, %v564
        %v566 = vpop.f32.mrf.mxu0
        %v567 = vadd.f32 %v419, %v566
        %568 = vmatmul.bf16.gmra.mxu0 %v529
        %v569 = vpop.f32.mrf.mxu0
        %v570 = vadd.f32 %v424, %v569
        %v571 = vpop.f32.mrf.mxu0
        %v572 = vadd.f32 %v429, %v571
        %573 = vmatmul.bf16.gmra.mxu0 %v532
        %v574 = vpop.f32.mrf.mxu0
        %v575 = vadd.f32 %v434, %v574
        %v576 = vpop.f32.mrf.mxu0
        %v577 = vadd.f32 %v439, %v576
        %578 = vmatmul.bf16.gmra.mxu0 %v535
        %v579 = vpop.f32.mrf.mxu0
        %v580 = vadd.f32 %v444, %v579
        %v581 = vpop.f32.mrf.mxu0
        %v582 = vadd.f32 %v449, %v581
        %583 = vmatmul.bf16.gmra.mxu0 %v538
        %v584 = vpop.f32.mrf.mxu0
        %v585 = vadd.f32 %v454, %v584
        %v586 = vpop.f32.mrf.mxu0
        %v587 = vadd.f32 %v459, %v586
        %588 = vmatmul.bf16.gmra.mxu0 %v541
        %v589 = vpop.f32.mrf.mxu0
        %v590 = vadd.f32 %v464, %v589
        %v591 = vpop.f32.mrf.mxu0
        %v592 = vadd.f32 %v469, %v591
        %593 = vmatmul.bf16.gmra.mxu0 %v544
        %v594 = vpop.f32.mrf.mxu0
        %v595 = vadd.f32 %v474, %v594
        %v596 = vpop.f32.mrf.mxu0
        %v597 = vadd.f32 %v479, %v596
        %598 = vdwg.mxu0
        %v599 = vmax.f32 %v560, 0.0
        %v600 = vmax.f32 %v562, 0.0
        %v601 = vmax.f32 %v565, 0.0
        %v602 = vmax.f32 %v567, 0.0
        %v603 = vmax.f32 %v570, 0.0
        %v604 = vmax.f32 %v572, 0.0
        %v605 = vmax.f32 %v575, 0.0
        %v606 = vmax.f32 %v577, 0.0
        %v607 = vmax.f32 %v580, 0.0
        %v608 = vmax.f32 %v582, 0.0
        %v609 = vmax.f32 %v585, 0.0
        %v610 = vmax.f32 %v587, 0.0
        %v611 = vmax.f32 %v590, 0.0
        %v612 = vmax.f32 %v592, 0.0
        %v613 = vmax.f32 %v595, 0.0
        %v614 = vmax.f32 %v597, 0.0
        %615 = vadd.xlane.f32.xlu0 %v599
        %v616 = vpop.xlane.xlu0 %615
        %617 = vadd.xlane.f32.xlu0 %v600
        %v618 = vpop.xlane.xlu0 %617
        %619 = vadd.xlane.f32.xlu0 %v601
        %v620 = vpop.xlane.xlu0 %619
        %621 = vadd.xlane.f32.xlu0 %v602
        %v622 = vpop.xlane.xlu0 %621
        %623 = vadd.xlane.f32.xlu0 %v603
        %v624 = vpop.xlane.xlu0 %623
        %625 = vadd.xlane.f32.xlu0 %v604
        %v626 = vpop.xlane.xlu0 %625
        %627 = vadd.xlane.f32.xlu0 %v605
        %v628 = vpop.xlane.xlu0 %627
        %629 = vadd.xlane.f32.xlu0 %v606
        %v630 = vpop.xlane.xlu0 %629
        %631 = vadd.xlane.f32.xlu0 %v607
        %v632 = vpop.xlane.xlu0 %631
        %633 = vadd.xlane.f32.xlu0 %v608
        %v634 = vpop.xlane.xlu0 %633
        %635 = vadd.xlane.f32.xlu0 %v609
        %v636 = vpop.xlane.xlu0 %635
        %637 = vadd.xlane.f32.xlu0 %v610
        %v638 = vpop.xlane.xlu0 %637
        %639 = vadd.xlane.f32.xlu0 %v611
        %v640 = vpop.xlane.xlu0 %639
        %641 = vadd.xlane.f32.xlu0 %v612
        %v642 = vpop.xlane.xlu0 %641
        %643 = vadd.xlane.f32.xlu0 %v613
        %v644 = vpop.xlane.xlu0 %643
        %645 = vadd.xlane.f32.xlu0 %v614
        %v646 = vpop.xlane.xlu0 %645
        %s647 = scalar_lea.vmem %s317, 2 [#allocation3]
        %v648 = vld [vmem:[%s647] sm:$0x3]
        %v650 = vsel %vm546, %v648, 0
        %652 = vmatpush.bf16.msra.mxu0 0
        %653 = vmatpush.bf16.msra.mxu0 0
        %654 = vmatpush.bf16.msra.mxu0 0
        %655 = vmatpush.bf16.msra.mxu0 0
        %656 = vmatpush.bf16.msra.mxu0 0
        %657 = vmatpush.bf16.msra.mxu0 0
        %658 = vmatpush.bf16.msra.mxu0 0
        %659 = vmatpush.bf16.msra.mxu0 %v650
        %660 = vmatmul.bf16.gmra.mxu0 %v523
        %v661 = vpop.f32.mrf.mxu0
        %v662 = vadd.f32 %v404, %v661
        %v663 = vpop.f32.mrf.mxu0
        %v664 = vadd.f32 %v409, %v663
        %665 = vmatmul.bf16.gmra.mxu0 %v526
        %v666 = vpop.f32.mrf.mxu0
        %v667 = vadd.f32 %v414, %v666
        %v668 = vpop.f32.mrf.mxu0
        %v669 = vadd.f32 %v419, %v668
        %670 = vmatmul.bf16.gmra.mxu0 %v529
        %v671 = vpop.f32.mrf.mxu0
        %v672 = vadd.f32 %v424, %v671
        %v673 = vpop.f32.mrf.mxu0
        %v674 = vadd.f32 %v429, %v673
        %675 = vmatmul.bf16.gmra.mxu0 %v532
        %v676 = vpop.f32.mrf.mxu0
        %v677 = vadd.f32 %v434, %v676
        %v678 = vpop.f32.mrf.mxu0
        %v679 = vadd.f32 %v439, %v678
        %680 = vmatmul.bf16.gmra.mxu0 %v535
        %v681 = vpop.f32.mrf.mxu0
        %v682 = vadd.f32 %v444, %v681
        %v683 = vpop.f32.mrf.mxu0
        %v684 = vadd.f32 %v449, %v683
        %685 = vmatmul.bf16.gmra.mxu0 %v538
        %v686 = vpop.f32.mrf.mxu0
        %v687 = vadd.f32 %v454, %v686
        %v688 = vpop.f32.mrf.mxu0
        %v689 = vadd.f32 %v459, %v688
        %690 = vmatmul.bf16.gmra.mxu0 %v541
        %v691 = vpop.f32.mrf.mxu0
        %v692 = vadd.f32 %v464, %v691
        %v693 = vpop.f32.mrf.mxu0
        %v694 = vadd.f32 %v469, %v693
        %695 = vmatmul.bf16.gmra.mxu0 %v544
        %v696 = vpop.f32.mrf.mxu0
        %v697 = vadd.f32 %v474, %v696
        %v698 = vpop.f32.mrf.mxu0
        %v699 = vadd.f32 %v479, %v698
        %700 = vdwg.mxu0
        %v701 = vmax.f32 %v662, 0.0
        %v702 = vmax.f32 %v664, 0.0
        %v703 = vmax.f32 %v667, 0.0
        %v704 = vmax.f32 %v669, 0.0
        %v705 = vmax.f32 %v672, 0.0
        %v706 = vmax.f32 %v674, 0.0
        %v707 = vmax.f32 %v677, 0.0
        %v708 = vmax.f32 %v679, 0.0
        %v709 = vmax.f32 %v682, 0.0
        %v710 = vmax.f32 %v684, 0.0
        %v711 = vmax.f32 %v687, 0.0
        %v712 = vmax.f32 %v689, 0.0
        %v713 = vmax.f32 %v692, 0.0
        %v714 = vmax.f32 %v694, 0.0
        %v715 = vmax.f32 %v697, 0.0
        %v716 = vmax.f32 %v699, 0.0
        %717 = vadd.xlane.f32.xlu0 %v701
        %v718 = vpop.xlane.xlu0 %717
        %719 = vadd.xlane.f32.xlu0 %v702
        %v720 = vpop.xlane.xlu0 %719
        %721 = vadd.xlane.f32.xlu0 %v703
        %v722 = vpop.xlane.xlu0 %721
        %723 = vadd.xlane.f32.xlu0 %v704
        %v724 = vpop.xlane.xlu0 %723
        %725 = vadd.xlane.f32.xlu0 %v705
        %v726 = vpop.xlane.xlu0 %725
        %727 = vadd.xlane.f32.xlu0 %v706
        %v728 = vpop.xlane.xlu0 %727
        %729 = vadd.xlane.f32.xlu0 %v707
        %v730 = vpop.xlane.xlu0 %729
        %731 = vadd.xlane.f32.xlu0 %v708
        %v732 = vpop.xlane.xlu0 %731
        %733 = vadd.xlane.f32.xlu0 %v709
        %v734 = vpop.xlane.xlu0 %733
        %735 = vadd.xlane.f32.xlu0 %v710
        %v736 = vpop.xlane.xlu0 %735
        %737 = vadd.xlane.f32.xlu0 %v711
        %v738 = vpop.xlane.xlu0 %737
        %739 = vadd.xlane.f32.xlu0 %v712
        %v740 = vpop.xlane.xlu0 %739
        %741 = vadd.xlane.f32.xlu0 %v713
        %v742 = vpop.xlane.xlu0 %741
        %743 = vadd.xlane.f32.xlu0 %v714
        %v744 = vpop.xlane.xlu0 %743
        %745 = vadd.xlane.f32.xlu0 %v715
        %v746 = vpop.xlane.xlu0 %745
        %747 = vadd.xlane.f32.xlu0 %v716
        %v748 = vpop.xlane.xlu0 %747
        %s749 = scalar_lea.vmem %s317, 4 [#allocation3]
        %v750 = vld [vmem:[%s749] sm:$0x3]
        %v752 = vsel %vm546, %v750, 0
        %754 = vmatpush.bf16.msra.mxu0 0
        %755 = vmatpush.bf16.msra.mxu0 0
        %756 = vmatpush.bf16.msra.mxu0 0
        %757 = vmatpush.bf16.msra.mxu0 0
        %758 = vmatpush.bf16.msra.mxu0 0
        %759 = vmatpush.bf16.msra.mxu0 0
        %760 = vmatpush.bf16.msra.mxu0 0
        %761 = vmatpush.bf16.msra.mxu0 %v752
        %762 = vmatmul.bf16.gmra.mxu0 %v523
        %v763 = vpop.f32.mrf.mxu0
        %v764 = vadd.f32 %v404, %v763
        %v765 = vpop.f32.mrf.mxu0
        %v766 = vadd.f32 %v409, %v765
        %767 = vmatmul.bf16.gmra.mxu0 %v526
        %v768 = vpop.f32.mrf.mxu0
        %v769 = vadd.f32 %v414, %v768
        %v770 = vpop.f32.mrf.mxu0
        %v771 = vadd.f32 %v419, %v770
        %772 = vmatmul.bf16.gmra.mxu0 %v529
        %v773 = vpop.f32.mrf.mxu0
        %v774 = vadd.f32 %v424, %v773
        %v775 = vpop.f32.mrf.mxu0
        %v776 = vadd.f32 %v429, %v775
        %777 = vmatmul.bf16.gmra.mxu0 %v532
        %v778 = vpop.f32.mrf.mxu0
        %v779 = vadd.f32 %v434, %v778
        %v780 = vpop.f32.mrf.mxu0
        %v781 = vadd.f32 %v439, %v780
        %782 = vmatmul.bf16.gmra.mxu0 %v535
        %v783 = vpop.f32.mrf.mxu0
        %v784 = vadd.f32 %v444, %v783
        %v785 = vpop.f32.mrf.mxu0
        %v786 = vadd.f32 %v449, %v785
        %787 = vmatmul.bf16.gmra.mxu0 %v538
        %v788 = vpop.f32.mrf.mxu0
        %v789 = vadd.f32 %v454, %v788
        %v790 = vpop.f32.mrf.mxu0
        %v791 = vadd.f32 %v459, %v790
        %792 = vmatmul.bf16.gmra.mxu0 %v541
        %v793 = vpop.f32.mrf.mxu0
        %v794 = vadd.f32 %v464, %v793
        %v795 = vpop.f32.mrf.mxu0
        %v796 = vadd.f32 %v469, %v795
        %797 = vmatmul.bf16.gmra.mxu0 %v544
        %v798 = vpop.f32.mrf.mxu0
        %v799 = vadd.f32 %v474, %v798
        %v800 = vpop.f32.mrf.mxu0
        %v801 = vadd.f32 %v479, %v800
        %802 = vdwg.mxu0
        %v803 = vmax.f32 %v764, 0.0
        %v804 = vmax.f32 %v766, 0.0
        %v805 = vmax.f32 %v769, 0.0
        %v806 = vmax.f32 %v771, 0.0
        %v807 = vmax.f32 %v774, 0.0
        %v808 = vmax.f32 %v776, 0.0
        %v809 = vmax.f32 %v779, 0.0
        %v810 = vmax.f32 %v781, 0.0
        %v811 = vmax.f32 %v784, 0.0
        %v812 = vmax.f32 %v786, 0.0
        %v813 = vmax.f32 %v789, 0.0
        %v814 = vmax.f32 %v791, 0.0
        %v815 = vmax.f32 %v794, 0.0
        %v816 = vmax.f32 %v796, 0.0
        %v817 = vmax.f32 %v799, 0.0
        %v818 = vmax.f32 %v801, 0.0
        %819 = vadd.xlane.f32.xlu0 %v803
        %v820 = vpop.xlane.xlu0 %819
        %821 = vadd.xlane.f32.xlu0 %v804
        %v822 = vpop.xlane.xlu0 %821
        %823 = vadd.xlane.f32.xlu0 %v805
        %v824 = vpop.xlane.xlu0 %823
        %825 = vadd.xlane.f32.xlu0 %v806
        %v826 = vpop.xlane.xlu0 %825
        %827 = vadd.xlane.f32.xlu0 %v807
        %v828 = vpop.xlane.xlu0 %827
        %829 = vadd.xlane.f32.xlu0 %v808
        %v830 = vpop.xlane.xlu0 %829
        %831 = vadd.xlane.f32.xlu0 %v809
        %v832 = vpop.xlane.xlu0 %831
        %833 = vadd.xlane.f32.xlu0 %v810
        %v834 = vpop.xlane.xlu0 %833
        %835 = vadd.xlane.f32.xlu0 %v811
        %v836 = vpop.xlane.xlu0 %835
        %837 = vadd.xlane.f32.xlu0 %v812
        %v838 = vpop.xlane.xlu0 %837
        %839 = vadd.xlane.f32.xlu0 %v813
        %v840 = vpop.xlane.xlu0 %839
        %841 = vadd.xlane.f32.xlu0 %v814
        %v842 = vpop.xlane.xlu0 %841
        %843 = vadd.xlane.f32.xlu0 %v815
        %v844 = vpop.xlane.xlu0 %843
        %845 = vadd.xlane.f32.xlu0 %v816
        %v846 = vpop.xlane.xlu0 %845
        %847 = vadd.xlane.f32.xlu0 %v817
        %v848 = vpop.xlane.xlu0 %847
        %849 = vadd.xlane.f32.xlu0 %v818
        %v850 = vpop.xlane.xlu0 %849
        %s851 = scalar_lea.vmem %s317, 6 [#allocation3]
        %v852 = vld [vmem:[%s851] sm:$0x3]
        %v854 = vsel %vm546, %v852, 0
        %856 = vmatpush.bf16.msra.mxu0 0
        %857 = vmatpush.bf16.msra.mxu0 0
        %858 = vmatpush.bf16.msra.mxu0 0
        %859 = vmatpush.bf16.msra.mxu0 0
        %860 = vmatpush.bf16.msra.mxu0 0
        %861 = vmatpush.bf16.msra.mxu0 0
        %862 = vmatpush.bf16.msra.mxu0 0
        %863 = vmatpush.bf16.msra.mxu0 %v854
        %864 = vmatmul.bf16.gmra.mxu0 %v523
        %v865 = vpop.f32.mrf.mxu0
        %v866 = vadd.f32 %v404, %v865
        %v867 = vpop.f32.mrf.mxu0
        %v868 = vadd.f32 %v409, %v867
        %869 = vmatmul.bf16.gmra.mxu0 %v526
        %v870 = vpop.f32.mrf.mxu0
        %v871 = vadd.f32 %v414, %v870
        %v872 = vpop.f32.mrf.mxu0
        %v873 = vadd.f32 %v419, %v872
        %874 = vmatmul.bf16.gmra.mxu0 %v529
        %v875 = vpop.f32.mrf.mxu0
        %v876 = vadd.f32 %v424, %v875
        %v877 = vpop.f32.mrf.mxu0
        %v878 = vadd.f32 %v429, %v877
        %879 = vmatmul.bf16.gmra.mxu0 %v532
        %v880 = vpop.f32.mrf.mxu0
        %v881 = vadd.f32 %v434, %v880
        %v882 = vpop.f32.mrf.mxu0
        %v883 = vadd.f32 %v439, %v882
        %884 = vmatmul.bf16.gmra.mxu0 %v535
        %v885 = vpop.f32.mrf.mxu0
        %v886 = vadd.f32 %v444, %v885
        %v887 = vpop.f32.mrf.mxu0
        %v888 = vadd.f32 %v449, %v887
        %889 = vmatmul.bf16.gmra.mxu0 %v538
        %v890 = vpop.f32.mrf.mxu0
        %v891 = vadd.f32 %v454, %v890
        %v892 = vpop.f32.mrf.mxu0
        %v893 = vadd.f32 %v459, %v892
        %894 = vmatmul.bf16.gmra.mxu0 %v541
        %v895 = vpop.f32.mrf.mxu0
        %v896 = vadd.f32 %v464, %v895
        %v897 = vpop.f32.mrf.mxu0
        %v898 = vadd.f32 %v469, %v897
        %899 = vmatmul.bf16.gmra.mxu0 %v544
        %v900 = vpop.f32.mrf.mxu0
        %v901 = vadd.f32 %v474, %v900
        %v902 = vpop.f32.mrf.mxu0
        %v903 = vadd.f32 %v479, %v902
        %904 = vdwg.mxu0
        %v905 = vmax.f32 %v866, 0.0
        %v906 = vmax.f32 %v868, 0.0
        %v907 = vmax.f32 %v871, 0.0
        %v908 = vmax.f32 %v873, 0.0
        %v909 = vmax.f32 %v876, 0.0
        %v910 = vmax.f32 %v878, 0.0
        %v911 = vmax.f32 %v881, 0.0
        %v912 = vmax.f32 %v883, 0.0
        %v913 = vmax.f32 %v886, 0.0
        %v914 = vmax.f32 %v888, 0.0
        %v915 = vmax.f32 %v891, 0.0
        %v916 = vmax.f32 %v893, 0.0
        %v917 = vmax.f32 %v896, 0.0
        %v918 = vmax.f32 %v898, 0.0
        %v919 = vmax.f32 %v901, 0.0
        %v920 = vmax.f32 %v903, 0.0
        %921 = vadd.xlane.f32.xlu0 %v905
        %v922 = vpop.xlane.xlu0 %921
        %923 = vadd.xlane.f32.xlu0 %v906
        %v924 = vpop.xlane.xlu0 %923
        %925 = vadd.xlane.f32.xlu0 %v907
        %v926 = vpop.xlane.xlu0 %925
        %927 = vadd.xlane.f32.xlu0 %v908
        %v928 = vpop.xlane.xlu0 %927
        %929 = vadd.xlane.f32.xlu0 %v909
        %v930 = vpop.xlane.xlu0 %929
        %931 = vadd.xlane.f32.xlu0 %v910
        %v932 = vpop.xlane.xlu0 %931
        %933 = vadd.xlane.f32.xlu0 %v911
        %v934 = vpop.xlane.xlu0 %933
        %935 = vadd.xlane.f32.xlu0 %v912
        %v936 = vpop.xlane.xlu0 %935
        %937 = vadd.xlane.f32.xlu0 %v913
        %v938 = vpop.xlane.xlu0 %937
        %939 = vadd.xlane.f32.xlu0 %v914
        %v940 = vpop.xlane.xlu0 %939
        %941 = vadd.xlane.f32.xlu0 %v915
        %v942 = vpop.xlane.xlu0 %941
        %943 = vadd.xlane.f32.xlu0 %v916
        %v944 = vpop.xlane.xlu0 %943
        %945 = vadd.xlane.f32.xlu0 %v917
        %v946 = vpop.xlane.xlu0 %945
        %947 = vadd.xlane.f32.xlu0 %v918
        %v948 = vpop.xlane.xlu0 %947
        %949 = vadd.xlane.f32.xlu0 %v919
        %v950 = vpop.xlane.xlu0 %949
        %951 = vadd.xlane.f32.xlu0 %v920
        %v952 = vpop.xlane.xlu0 %951
        %s953 = scalar_lea.vmem %s317, 8 [#allocation3]
        %v954 = vld [vmem:[%s953] sm:$0x3]
        %v956 = vsel %vm546, %v954, 0
        %958 = vmatpush.bf16.msra.mxu0 0
        %959 = vmatpush.bf16.msra.mxu0 0
        %960 = vmatpush.bf16.msra.mxu0 0
        %961 = vmatpush.bf16.msra.mxu0 0
        %962 = vmatpush.bf16.msra.mxu0 0
        %963 = vmatpush.bf16.msra.mxu0 0
        %964 = vmatpush.bf16.msra.mxu0 0
        %965 = vmatpush.bf16.msra.mxu0 %v956
        %966 = vmatmul.bf16.gmra.mxu0 %v523
        %v967 = vpop.f32.mrf.mxu0
        %v968 = vadd.f32 %v404, %v967
        %v969 = vpop.f32.mrf.mxu0
        %v970 = vadd.f32 %v409, %v969
        %971 = vmatmul.bf16.gmra.mxu0 %v526
        %v972 = vpop.f32.mrf.mxu0
        %v973 = vadd.f32 %v414, %v972
        %v974 = vpop.f32.mrf.mxu0
        %v975 = vadd.f32 %v419, %v974
        %976 = vmatmul.bf16.gmra.mxu0 %v529
        %v977 = vpop.f32.mrf.mxu0
        %v978 = vadd.f32 %v424, %v977
        %v979 = vpop.f32.mrf.mxu0
        %v980 = vadd.f32 %v429, %v979
        %981 = vmatmul.bf16.gmra.mxu0 %v532
        %v982 = vpop.f32.mrf.mxu0
        %v983 = vadd.f32 %v434, %v982
        %v984 = vpop.f32.mrf.mxu0
        %v985 = vadd.f32 %v439, %v984
        %986 = vmatmul.bf16.gmra.mxu0 %v535
        %v987 = vpop.f32.mrf.mxu0
        %v988 = vadd.f32 %v444, %v987
        %v989 = vpop.f32.mrf.mxu0
        %v990 = vadd.f32 %v449, %v989
        %991 = vmatmul.bf16.gmra.mxu0 %v538
        %v992 = vpop.f32.mrf.mxu0
        %v993 = vadd.f32 %v454, %v992
        %v994 = vpop.f32.mrf.mxu0
        %v995 = vadd.f32 %v459, %v994
        %996 = vmatmul.bf16.gmra.mxu0 %v541
        %v997 = vpop.f32.mrf.mxu0
        %v998 = vadd.f32 %v464, %v997
        %v999 = vpop.f32.mrf.mxu0
        %v1000 = vadd.f32 %v469, %v999
        %1001 = vmatmul.bf16.gmra.mxu0 %v544
        %v1002 = vpop.f32.mrf.mxu0
        %v1003 = vadd.f32 %v474, %v1002
        %v1004 = vpop.f32.mrf.mxu0
        %v1005 = vadd.f32 %v479, %v1004
        %1006 = vdwg.mxu0
        %v1007 = vmax.f32 %v968, 0.0
        %v1008 = vmax.f32 %v970, 0.0
        %v1009 = vmax.f32 %v973, 0.0
        %v1010 = vmax.f32 %v975, 0.0
        %v1011 = vmax.f32 %v978, 0.0
        %v1012 = vmax.f32 %v980, 0.0
        %v1013 = vmax.f32 %v983, 0.0
        %v1014 = vmax.f32 %v985, 0.0
        %v1015 = vmax.f32 %v988, 0.0
        %v1016 = vmax.f32 %v990, 0.0
        %v1017 = vmax.f32 %v993, 0.0
        %v1018 = vmax.f32 %v995, 0.0
        %v1019 = vmax.f32 %v998, 0.0
        %v1020 = vmax.f32 %v1000, 0.0
        %v1021 = vmax.f32 %v1003, 0.0
        %v1022 = vmax.f32 %v1005, 0.0
        %1023 = vadd.xlane.f32.xlu0 %v1007
        %v1024 = vpop.xlane.xlu0 %1023
        %1025 = vadd.xlane.f32.xlu0 %v1008
        %v1026 = vpop.xlane.xlu0 %1025
        %1027 = vadd.xlane.f32.xlu0 %v1009
        %v1028 = vpop.xlane.xlu0 %1027
        %1029 = vadd.xlane.f32.xlu0 %v1010
        %v1030 = vpop.xlane.xlu0 %1029
        %1031 = vadd.xlane.f32.xlu0 %v1011
        %v1032 = vpop.xlane.xlu0 %1031
        %1033 = vadd.xlane.f32.xlu0 %v1012
        %v1034 = vpop.xlane.xlu0 %1033
        %1035 = vadd.xlane.f32.xlu0 %v1013
        %v1036 = vpop.xlane.xlu0 %1035
        %1037 = vadd.xlane.f32.xlu0 %v1014
        %v1038 = vpop.xlane.xlu0 %1037
        %1039 = vadd.xlane.f32.xlu0 %v1015
        %v1040 = vpop.xlane.xlu0 %1039
        %1041 = vadd.xlane.f32.xlu0 %v1016
        %v1042 = vpop.xlane.xlu0 %1041
        %1043 = vadd.xlane.f32.xlu0 %v1017
        %v1044 = vpop.xlane.xlu0 %1043
        %1045 = vadd.xlane.f32.xlu0 %v1018
        %v1046 = vpop.xlane.xlu0 %1045
        %1047 = vadd.xlane.f32.xlu0 %v1019
        %v1048 = vpop.xlane.xlu0 %1047
        %1049 = vadd.xlane.f32.xlu0 %v1020
        %v1050 = vpop.xlane.xlu0 %1049
        %1051 = vadd.xlane.f32.xlu0 %v1021
        %v1052 = vpop.xlane.xlu0 %1051
        %1053 = vadd.xlane.f32.xlu0 %v1022
        %v1054 = vpop.xlane.xlu0 %1053
        %s1055 = scalar_lea.vmem %s317, 10 [#allocation3]
        %v1056 = vld [vmem:[%s1055] sm:$0x3]
        %v1058 = vsel %vm546, %v1056, 0
        %1060 = vmatpush.bf16.msra.mxu0 0
        %1061 = vmatpush.bf16.msra.mxu0 0
        %1062 = vmatpush.bf16.msra.mxu0 0
        %1063 = vmatpush.bf16.msra.mxu0 0
        %1064 = vmatpush.bf16.msra.mxu0 0
        %1065 = vmatpush.bf16.msra.mxu0 0
        %1066 = vmatpush.bf16.msra.mxu0 0
        %1067 = vmatpush.bf16.msra.mxu0 %v1058
        %1068 = vmatmul.bf16.gmra.mxu0 %v523
        %v1069 = vpop.f32.mrf.mxu0
        %v1070 = vadd.f32 %v404, %v1069
        %v1071 = vpop.f32.mrf.mxu0
        %v1072 = vadd.f32 %v409, %v1071
        %1073 = vmatmul.bf16.gmra.mxu0 %v526
        %v1074 = vpop.f32.mrf.mxu0
        %v1075 = vadd.f32 %v414, %v1074
        %v1076 = vpop.f32.mrf.mxu0
        %v1077 = vadd.f32 %v419, %v1076
        %1078 = vmatmul.bf16.gmra.mxu0 %v529
        %v1079 = vpop.f32.mrf.mxu0
        %v1080 = vadd.f32 %v424, %v1079
        %v1081 = vpop.f32.mrf.mxu0
        %v1082 = vadd.f32 %v429, %v1081
        %1083 = vmatmul.bf16.gmra.mxu0 %v532
        %v1084 = vpop.f32.mrf.mxu0
        %v1085 = vadd.f32 %v434, %v1084
        %v1086 = vpop.f32.mrf.mxu0
        %v1087 = vadd.f32 %v439, %v1086
        %1088 = vmatmul.bf16.gmra.mxu0 %v535
        %v1089 = vpop.f32.mrf.mxu0
        %v1090 = vadd.f32 %v444, %v1089
        %v1091 = vpop.f32.mrf.mxu0
        %v1092 = vadd.f32 %v449, %v1091
        %1093 = vmatmul.bf16.gmra.mxu0 %v538
        %v1094 = vpop.f32.mrf.mxu0
        %v1095 = vadd.f32 %v454, %v1094
        %v1096 = vpop.f32.mrf.mxu0
        %v1097 = vadd.f32 %v459, %v1096
        %1098 = vmatmul.bf16.gmra.mxu0 %v541
        %v1099 = vpop.f32.mrf.mxu0
        %v1100 = vadd.f32 %v464, %v1099
        %v1101 = vpop.f32.mrf.mxu0
        %v1102 = vadd.f32 %v469, %v1101
        %1103 = vmatmul.bf16.gmra.mxu0 %v544
        %v1104 = vpop.f32.mrf.mxu0
        %v1105 = vadd.f32 %v474, %v1104
        %v1106 = vpop.f32.mrf.mxu0
        %v1107 = vadd.f32 %v479, %v1106
        %1108 = vdwg.mxu0
        %v1109 = vmax.f32 %v1070, 0.0
        %v1110 = vmax.f32 %v1072, 0.0
        %v1111 = vmax.f32 %v1075, 0.0
        %v1112 = vmax.f32 %v1077, 0.0
        %v1113 = vmax.f32 %v1080, 0.0
        %v1114 = vmax.f32 %v1082, 0.0
        %v1115 = vmax.f32 %v1085, 0.0
        %v1116 = vmax.f32 %v1087, 0.0
        %v1117 = vmax.f32 %v1090, 0.0
        %v1118 = vmax.f32 %v1092, 0.0
        %v1119 = vmax.f32 %v1095, 0.0
        %v1120 = vmax.f32 %v1097, 0.0
        %v1121 = vmax.f32 %v1100, 0.0
        %v1122 = vmax.f32 %v1102, 0.0
        %v1123 = vmax.f32 %v1105, 0.0
        %v1124 = vmax.f32 %v1107, 0.0
        %1125 = vadd.xlane.f32.xlu0 %v1109
        %v1126 = vpop.xlane.xlu0 %1125
        %1127 = vadd.xlane.f32.xlu0 %v1110
        %v1128 = vpop.xlane.xlu0 %1127
        %1129 = vadd.xlane.f32.xlu0 %v1111
        %v1130 = vpop.xlane.xlu0 %1129
        %1131 = vadd.xlane.f32.xlu0 %v1112
        %v1132 = vpop.xlane.xlu0 %1131
        %1133 = vadd.xlane.f32.xlu0 %v1113
        %v1134 = vpop.xlane.xlu0 %1133
        %1135 = vadd.xlane.f32.xlu0 %v1114
        %v1136 = vpop.xlane.xlu0 %1135
        %1137 = vadd.xlane.f32.xlu0 %v1115
        %v1138 = vpop.xlane.xlu0 %1137
        %1139 = vadd.xlane.f32.xlu0 %v1116
        %v1140 = vpop.xlane.xlu0 %1139
        %1141 = vadd.xlane.f32.xlu0 %v1117
        %v1142 = vpop.xlane.xlu0 %1141
        %1143 = vadd.xlane.f32.xlu0 %v1118
        %v1144 = vpop.xlane.xlu0 %1143
        %1145 = vadd.xlane.f32.xlu0 %v1119
        %v1146 = vpop.xlane.xlu0 %1145
        %1147 = vadd.xlane.f32.xlu0 %v1120
        %v1148 = vpop.xlane.xlu0 %1147
        %1149 = vadd.xlane.f32.xlu0 %v1121
        %v1150 = vpop.xlane.xlu0 %1149
        %1151 = vadd.xlane.f32.xlu0 %v1122
        %v1152 = vpop.xlane.xlu0 %1151
        %1153 = vadd.xlane.f32.xlu0 %v1123
        %v1154 = vpop.xlane.xlu0 %1153
        %1155 = vadd.xlane.f32.xlu0 %v1124
        %v1156 = vpop.xlane.xlu0 %1155
        %s1157 = scalar_lea.vmem %s317, 12 [#allocation3]
        %v1158 = vld [vmem:[%s1157] sm:$0x3]
        %v1160 = vsel %vm546, %v1158, 0
        %1162 = vmatpush.bf16.msra.mxu0 0
        %1163 = vmatpush.bf16.msra.mxu0 0
        %1164 = vmatpush.bf16.msra.mxu0 0
        %1165 = vmatpush.bf16.msra.mxu0 0
        %1166 = vmatpush.bf16.msra.mxu0 0
        %1167 = vmatpush.bf16.msra.mxu0 0
        %1168 = vmatpush.bf16.msra.mxu0 0
        %1169 = vmatpush.bf16.msra.mxu0 %v1160
        %1170 = vmatmul.bf16.gmra.mxu0 %v523
        %v1171 = vpop.f32.mrf.mxu0
        %v1172 = vadd.f32 %v404, %v1171
        %v1173 = vpop.f32.mrf.mxu0
        %v1174 = vadd.f32 %v409, %v1173
        %1175 = vmatmul.bf16.gmra.mxu0 %v526
        %v1176 = vpop.f32.mrf.mxu0
        %v1177 = vadd.f32 %v414, %v1176
        %v1178 = vpop.f32.mrf.mxu0
        %v1179 = vadd.f32 %v419, %v1178
        %1180 = vmatmul.bf16.gmra.mxu0 %v529
        %v1181 = vpop.f32.mrf.mxu0
        %v1182 = vadd.f32 %v424, %v1181
        %v1183 = vpop.f32.mrf.mxu0
        %v1184 = vadd.f32 %v429, %v1183
        %1185 = vmatmul.bf16.gmra.mxu0 %v532
        %v1186 = vpop.f32.mrf.mxu0
        %v1187 = vadd.f32 %v434, %v1186
        %v1188 = vpop.f32.mrf.mxu0
        %v1189 = vadd.f32 %v439, %v1188
        %1190 = vmatmul.bf16.gmra.mxu0 %v535
        %v1191 = vpop.f32.mrf.mxu0
        %v1192 = vadd.f32 %v444, %v1191
        %v1193 = vpop.f32.mrf.mxu0
        %v1194 = vadd.f32 %v449, %v1193
        %1195 = vmatmul.bf16.gmra.mxu0 %v538
        %v1196 = vpop.f32.mrf.mxu0
        %v1197 = vadd.f32 %v454, %v1196
        %v1198 = vpop.f32.mrf.mxu0
        %v1199 = vadd.f32 %v459, %v1198
        %1200 = vmatmul.bf16.gmra.mxu0 %v541
        %v1201 = vpop.f32.mrf.mxu0
        %v1202 = vadd.f32 %v464, %v1201
        %v1203 = vpop.f32.mrf.mxu0
        %v1204 = vadd.f32 %v469, %v1203
        %1205 = vmatmul.bf16.gmra.mxu0 %v544
        %v1206 = vpop.f32.mrf.mxu0
        %v1207 = vadd.f32 %v474, %v1206
        %v1208 = vpop.f32.mrf.mxu0
        %v1209 = vadd.f32 %v479, %v1208
        %1210 = vdwg.mxu0
        %v1211 = vmax.f32 %v1172, 0.0
        %v1212 = vmax.f32 %v1174, 0.0
        %v1213 = vmax.f32 %v1177, 0.0
        %v1214 = vmax.f32 %v1179, 0.0
        %v1215 = vmax.f32 %v1182, 0.0
        %v1216 = vmax.f32 %v1184, 0.0
        %v1217 = vmax.f32 %v1187, 0.0
        %v1218 = vmax.f32 %v1189, 0.0
        %v1219 = vmax.f32 %v1192, 0.0
        %v1220 = vmax.f32 %v1194, 0.0
        %v1221 = vmax.f32 %v1197, 0.0
        %v1222 = vmax.f32 %v1199, 0.0
        %v1223 = vmax.f32 %v1202, 0.0
        %v1224 = vmax.f32 %v1204, 0.0
        %v1225 = vmax.f32 %v1207, 0.0
        %v1226 = vmax.f32 %v1209, 0.0
        %1227 = vadd.xlane.f32.xlu0 %v1211
        %v1228 = vpop.xlane.xlu0 %1227
        %1229 = vadd.xlane.f32.xlu0 %v1212
        %v1230 = vpop.xlane.xlu0 %1229
        %1231 = vadd.xlane.f32.xlu0 %v1213
        %v1232 = vpop.xlane.xlu0 %1231
        %1233 = vadd.xlane.f32.xlu0 %v1214
        %v1234 = vpop.xlane.xlu0 %1233
        %1235 = vadd.xlane.f32.xlu0 %v1215
        %v1236 = vpop.xlane.xlu0 %1235
        %1237 = vadd.xlane.f32.xlu0 %v1216
        %v1238 = vpop.xlane.xlu0 %1237
        %1239 = vadd.xlane.f32.xlu0 %v1217
        %v1240 = vpop.xlane.xlu0 %1239
        %1241 = vadd.xlane.f32.xlu0 %v1218
        %v1242 = vpop.xlane.xlu0 %1241
        %1243 = vadd.xlane.f32.xlu0 %v1219
        %v1244 = vpop.xlane.xlu0 %1243
        %1245 = vadd.xlane.f32.xlu0 %v1220
        %v1246 = vpop.xlane.xlu0 %1245
        %1247 = vadd.xlane.f32.xlu0 %v1221
        %v1248 = vpop.xlane.xlu0 %1247
        %1249 = vadd.xlane.f32.xlu0 %v1222
        %v1250 = vpop.xlane.xlu0 %1249
        %1251 = vadd.xlane.f32.xlu0 %v1223
        %v1252 = vpop.xlane.xlu0 %1251
        %1253 = vadd.xlane.f32.xlu0 %v1224
        %v1254 = vpop.xlane.xlu0 %1253
        %1255 = vadd.xlane.f32.xlu0 %v1225
        %v1256 = vpop.xlane.xlu0 %1255
        %1257 = vadd.xlane.f32.xlu0 %v1226
        %v1258 = vpop.xlane.xlu0 %1257
        %s1259 = scalar_lea.vmem %s317, 14 [#allocation3]
        %v1260 = vld [vmem:[%s1259] sm:$0x3]
        %v1262 = vsel %vm546, %v1260, 0
        %1264 = vmatpush.bf16.msra.mxu0 0
        %1265 = vmatpush.bf16.msra.mxu0 0
        %1266 = vmatpush.bf16.msra.mxu0 0
        %1267 = vmatpush.bf16.msra.mxu0 0
        %1268 = vmatpush.bf16.msra.mxu0 0
        %1269 = vmatpush.bf16.msra.mxu0 0
        %1270 = vmatpush.bf16.msra.mxu0 0
        %1271 = vmatpush.bf16.msra.mxu0 %v1262
        %1272 = vmatmul.bf16.gmra.mxu0 %v523
        %v1273 = vpop.f32.mrf.mxu0
        %v1274 = vadd.f32 %v404, %v1273
        %v1275 = vpop.f32.mrf.mxu0
        %v1276 = vadd.f32 %v409, %v1275
        %1277 = vmatmul.bf16.gmra.mxu0 %v526
        %v1278 = vpop.f32.mrf.mxu0
        %v1279 = vadd.f32 %v414, %v1278
        %v1280 = vpop.f32.mrf.mxu0
        %v1281 = vadd.f32 %v419, %v1280
        %1282 = vmatmul.bf16.gmra.mxu0 %v529
        %v1283 = vpop.f32.mrf.mxu0
        %v1284 = vadd.f32 %v424, %v1283
        %v1285 = vpop.f32.mrf.mxu0
        %v1286 = vadd.f32 %v429, %v1285
        %1287 = vmatmul.bf16.gmra.mxu0 %v532
        %v1288 = vpop.f32.mrf.mxu0
        %v1289 = vadd.f32 %v434, %v1288
        %v1290 = vpop.f32.mrf.mxu0
        %v1291 = vadd.f32 %v439, %v1290
        %1292 = vmatmul.bf16.gmra.mxu0 %v535
        %v1293 = vpop.f32.mrf.mxu0
        %v1294 = vadd.f32 %v444, %v1293
        %v1295 = vpop.f32.mrf.mxu0
        %v1296 = vadd.f32 %v449, %v1295
        %1297 = vmatmul.bf16.gmra.mxu0 %v538
        %v1298 = vpop.f32.mrf.mxu0
        %v1299 = vadd.f32 %v454, %v1298
        %v1300 = vpop.f32.mrf.mxu0
        %v1301 = vadd.f32 %v459, %v1300
        %1302 = vmatmul.bf16.gmra.mxu0 %v541
        %v1303 = vpop.f32.mrf.mxu0
        %v1304 = vadd.f32 %v464, %v1303
        %v1305 = vpop.f32.mrf.mxu0
        %v1306 = vadd.f32 %v469, %v1305
        %1307 = vmatmul.bf16.gmra.mxu0 %v544
        %v1308 = vpop.f32.mrf.mxu0
        %v1309 = vadd.f32 %v474, %v1308
        %v1310 = vpop.f32.mrf.mxu0
        %v1311 = vadd.f32 %v479, %v1310
        %1312 = vdwg.mxu0
        %v1313 = vmax.f32 %v1274, 0.0
        %v1314 = vmax.f32 %v1276, 0.0
        %v1315 = vmax.f32 %v1279, 0.0
        %v1316 = vmax.f32 %v1281, 0.0
        %v1317 = vmax.f32 %v1284, 0.0
        %v1318 = vmax.f32 %v1286, 0.0
        %v1319 = vmax.f32 %v1289, 0.0
        %v1320 = vmax.f32 %v1291, 0.0
        %v1321 = vmax.f32 %v1294, 0.0
        %v1322 = vmax.f32 %v1296, 0.0
        %v1323 = vmax.f32 %v1299, 0.0
        %v1324 = vmax.f32 %v1301, 0.0
        %v1325 = vmax.f32 %v1304, 0.0
        %v1326 = vmax.f32 %v1306, 0.0
        %v1327 = vmax.f32 %v1309, 0.0
        %v1328 = vmax.f32 %v1311, 0.0
        %1329 = vadd.xlane.f32.xlu0 %v1313
        %v1330 = vpop.xlane.xlu0 %1329
        %1331 = vadd.xlane.f32.xlu0 %v1314
        %v1332 = vpop.xlane.xlu0 %1331
        %1333 = vadd.xlane.f32.xlu0 %v1315
        %v1334 = vpop.xlane.xlu0 %1333
        %1335 = vadd.xlane.f32.xlu0 %v1316
        %v1336 = vpop.xlane.xlu0 %1335
        %1337 = vadd.xlane.f32.xlu0 %v1317
        %v1338 = vpop.xlane.xlu0 %1337
        %1339 = vadd.xlane.f32.xlu0 %v1318
        %v1340 = vpop.xlane.xlu0 %1339
        %1341 = vadd.xlane.f32.xlu0 %v1319
        %v1342 = vpop.xlane.xlu0 %1341
        %1343 = vadd.xlane.f32.xlu0 %v1320
        %v1344 = vpop.xlane.xlu0 %1343
        %1345 = vadd.xlane.f32.xlu0 %v1321
        %v1346 = vpop.xlane.xlu0 %1345
        %1347 = vadd.xlane.f32.xlu0 %v1322
        %v1348 = vpop.xlane.xlu0 %1347
        %1349 = vadd.xlane.f32.xlu0 %v1323
        %v1350 = vpop.xlane.xlu0 %1349
        %1351 = vadd.xlane.f32.xlu0 %v1324
        %v1352 = vpop.xlane.xlu0 %1351
        %1353 = vadd.xlane.f32.xlu0 %v1325
        %v1354 = vpop.xlane.xlu0 %1353
        %1355 = vadd.xlane.f32.xlu0 %v1326
        %v1356 = vpop.xlane.xlu0 %1355
        %1357 = vadd.xlane.f32.xlu0 %v1327
        %v1358 = vpop.xlane.xlu0 %1357
        %1359 = vadd.xlane.f32.xlu0 %v1328
        %v1360 = vpop.xlane.xlu0 %1359
        %v1361 = vld [vmem:[#allocation2] sm:$0xff]
        %v1362 = vld [vmem:[#allocation2 + $0x8] sm:$0xff]
        %v1363 = vld [vmem:[#allocation2 + $0x10] sm:$0xff]
        %v1364 = vld [vmem:[#allocation2 + $0x18] sm:$0xff]
        %v1365 = vld [vmem:[#allocation2 + $0x20] sm:$0xff]
        %v1366 = vld [vmem:[#allocation2 + $0x28] sm:$0xff]
        %v1367 = vld [vmem:[#allocation2 + $0x30] sm:$0xff]
        %v1368 = vld [vmem:[#allocation2 + $0x38] sm:$0xff]
        %v1369 = vld [vmem:[#allocation2 + $0x40] sm:$0xff]
        %v1370 = vld [vmem:[#allocation2 + $0x48] sm:$0xff]
        %v1371 = vld [vmem:[#allocation2 + $0x50] sm:$0xff]
        %v1372 = vld [vmem:[#allocation2 + $0x58] sm:$0xff]
        %v1373 = vld [vmem:[#allocation2 + $0x60] sm:$0xff]
        %v1374 = vld [vmem:[#allocation2 + $0x68] sm:$0xff]
        %v1375 = vld [vmem:[#allocation2 + $0x70] sm:$0xff]
        %v1376 = vld [vmem:[#allocation2 + $0x78] sm:$0xff]
        %vm1377 = vcmask 7168
        %v1378 = vsel %vm1377, %v616, %v718
        %v1379 = vsel %vm1377, %v618, %v720
        %v1380 = vsel %vm1377, %v620, %v722
        %v1381 = vsel %vm1377, %v622, %v724
        %v1382 = vsel %vm1377, %v624, %v726
        %v1383 = vsel %vm1377, %v626, %v728
        %v1384 = vsel %vm1377, %v628, %v730
        %v1385 = vsel %vm1377, %v630, %v732
        %v1386 = vsel %vm1377, %v632, %v734
        %v1387 = vsel %vm1377, %v634, %v736
        %v1388 = vsel %vm1377, %v636, %v738
        %v1389 = vsel %vm1377, %v638, %v740
        %v1390 = vsel %vm1377, %v640, %v742
        %v1391 = vsel %vm1377, %v642, %v744
        %v1392 = vsel %vm1377, %v644, %v746
        %v1393 = vsel %vm1377, %v646, %v748
        %vm1394 = vcmask 15360
        %v1395 = vsel %vm1394, %v1378, %v820
        %v1396 = vsel %vm1394, %v1379, %v822
        %v1397 = vsel %vm1394, %v1380, %v824
        %v1398 = vsel %vm1394, %v1381, %v826
        %v1399 = vsel %vm1394, %v1382, %v828
        %v1400 = vsel %vm1394, %v1383, %v830
        %v1401 = vsel %vm1394, %v1384, %v832
        %v1402 = vsel %vm1394, %v1385, %v834
        %v1403 = vsel %vm1394, %v1386, %v836
        %v1404 = vsel %vm1394, %v1387, %v838
        %v1405 = vsel %vm1394, %v1388, %v840
        %v1406 = vsel %vm1394, %v1389, %v842
        %v1407 = vsel %vm1394, %v1390, %v844
        %v1408 = vsel %vm1394, %v1391, %v846
        %v1409 = vsel %vm1394, %v1392, %v848
        %v1410 = vsel %vm1394, %v1393, %v850
        %vm1411 = vcmask 23552
        %v1412 = vsel %vm1411, %v1395, %v922
        %v1413 = vsel %vm1411, %v1396, %v924
        %v1414 = vsel %vm1411, %v1397, %v926
        %v1415 = vsel %vm1411, %v1398, %v928
        %v1416 = vsel %vm1411, %v1399, %v930
        %v1417 = vsel %vm1411, %v1400, %v932
        %v1418 = vsel %vm1411, %v1401, %v934
        %v1419 = vsel %vm1411, %v1402, %v936
        %v1420 = vsel %vm1411, %v1403, %v938
        %v1421 = vsel %vm1411, %v1404, %v940
        %v1422 = vsel %vm1411, %v1405, %v942
        %v1423 = vsel %vm1411, %v1406, %v944
        %v1424 = vsel %vm1411, %v1407, %v946
        %v1425 = vsel %vm1411, %v1408, %v948
        %v1426 = vsel %vm1411, %v1409, %v950
        %v1427 = vsel %vm1411, %v1410, %v952
        %v1428 = vsel %vm521, %v1412, %v1024
        %v1429 = vsel %vm521, %v1413, %v1026
        %v1430 = vsel %vm521, %v1414, %v1028
        %v1431 = vsel %vm521, %v1415, %v1030
        %v1432 = vsel %vm521, %v1416, %v1032
        %v1433 = vsel %vm521, %v1417, %v1034
        %v1434 = vsel %vm521, %v1418, %v1036
        %v1435 = vsel %vm521, %v1419, %v1038
        %v1436 = vsel %vm521, %v1420, %v1040
        %v1437 = vsel %vm521, %v1421, %v1042
        %v1438 = vsel %vm521, %v1422, %v1044
        %v1439 = vsel %vm521, %v1423, %v1046
        %v1440 = vsel %vm521, %v1424, %v1048
        %v1441 = vsel %vm521, %v1425, %v1050
        %v1442 = vsel %vm521, %v1426, %v1052
        %v1443 = vsel %vm521, %v1427, %v1054
        %vm1444 = vcmask 39936
        %v1445 = vsel %vm1444, %v1428, %v1126
        %v1446 = vsel %vm1444, %v1429, %v1128
        %v1447 = vsel %vm1444, %v1430, %v1130
        %v1448 = vsel %vm1444, %v1431, %v1132
        %v1449 = vsel %vm1444, %v1432, %v1134
        %v1450 = vsel %vm1444, %v1433, %v1136
        %v1451 = vsel %vm1444, %v1434, %v1138
        %v1452 = vsel %vm1444, %v1435, %v1140
        %v1453 = vsel %vm1444, %v1436, %v1142
        %v1454 = vsel %vm1444, %v1437, %v1144
        %v1455 = vsel %vm1444, %v1438, %v1146
        %v1456 = vsel %vm1444, %v1439, %v1148
        %v1457 = vsel %vm1444, %v1440, %v1150
        %v1458 = vsel %vm1444, %v1441, %v1152
        %v1459 = vsel %vm1444, %v1442, %v1154
        %v1460 = vsel %vm1444, %v1443, %v1156
        %vm1461 = vcmask 48128
        %v1462 = vsel %vm1461, %v1445, %v1228
        %v1463 = vsel %vm1461, %v1446, %v1230
        %v1464 = vsel %vm1461, %v1447, %v1232
        %v1465 = vsel %vm1461, %v1448, %v1234
        %v1466 = vsel %vm1461, %v1449, %v1236
        %v1467 = vsel %vm1461, %v1450, %v1238
        %v1468 = vsel %vm1461, %v1451, %v1240
        %v1469 = vsel %vm1461, %v1452, %v1242
        %v1470 = vsel %vm1461, %v1453, %v1244
        %v1471 = vsel %vm1461, %v1454, %v1246
        %v1472 = vsel %vm1461, %v1455, %v1248
        %v1473 = vsel %vm1461, %v1456, %v1250
        %v1474 = vsel %vm1461, %v1457, %v1252
        %v1475 = vsel %vm1461, %v1458, %v1254
        %v1476 = vsel %vm1461, %v1459, %v1256
        %v1477 = vsel %vm1461, %v1460, %v1258
        %vm1478 = vcmask 56320
        %v1479 = vsel %vm1478, %v1462, %v1330
        %v1480 = vsel %vm1478, %v1463, %v1332
        %v1481 = vsel %vm1478, %v1464, %v1334
        %v1482 = vsel %vm1478, %v1465, %v1336
        %v1483 = vsel %vm1478, %v1466, %v1338
        %v1484 = vsel %vm1478, %v1467, %v1340
        %v1485 = vsel %vm1478, %v1468, %v1342
        %v1486 = vsel %vm1478, %v1469, %v1344
        %v1487 = vsel %vm1478, %v1470, %v1346
        %v1488 = vsel %vm1478, %v1471, %v1348
        %v1489 = vsel %vm1478, %v1472, %v1350
        %v1490 = vsel %vm1478, %v1473, %v1352
        %v1491 = vsel %vm1478, %v1474, %v1354
        %v1492 = vsel %vm1478, %v1475, %v1356
        %v1493 = vsel %vm1478, %v1476, %v1358
        %v1494 = vsel %vm1478, %v1477, %v1360
        %v1495 = vadd.f32 %v1361, %v1479
        %v1496 = vadd.f32 %v1362, %v1480
        %v1497 = vadd.f32 %v1363, %v1481
        %v1498 = vadd.f32 %v1364, %v1482
        %v1499 = vadd.f32 %v1365, %v1483
        %v1500 = vadd.f32 %v1366, %v1484
        %v1501 = vadd.f32 %v1367, %v1485
        %v1502 = vadd.f32 %v1368, %v1486
        %v1503 = vadd.f32 %v1369, %v1487
        %v1504 = vadd.f32 %v1370, %v1488
        %v1505 = vadd.f32 %v1371, %v1489
        %v1506 = vadd.f32 %v1372, %v1490
        %v1507 = vadd.f32 %v1373, %v1491
        %v1508 = vadd.f32 %v1374, %v1492
        %v1509 = vadd.f32 %v1375, %v1493
        %v1510 = vadd.f32 %v1376, %v1494
        %vm1511 = vcmask 64512
        %1512 = vst.msk [vmem:[#allocation2] sm:$0xff] %vm1511, %v1495
        %1513 = vst.msk [vmem:[#allocation2 + $0x8] sm:$0xff] %vm1511, %v1496
        %1514 = vst.msk [vmem:[#allocation2 + $0x10] sm:$0xff] %vm1511, %v1497
        %1515 = vst.msk [vmem:[#allocation2 + $0x18] sm:$0xff] %vm1511, %v1498
        %1516 = vst.msk [vmem:[#allocation2 + $0x20] sm:$0xff] %vm1511, %v1499
        %1517 = vst.msk [vmem:[#allocation2 + $0x28] sm:$0xff] %vm1511, %v1500
        %1518 = vst.msk [vmem:[#allocation2 + $0x30] sm:$0xff] %vm1511, %v1501
        %1519 = vst.msk [vmem:[#allocation2 + $0x38] sm:$0xff] %vm1511, %v1502
        %1520 = vst.msk [vmem:[#allocation2 + $0x40] sm:$0xff] %vm1511, %v1503
        %1521 = vst.msk [vmem:[#allocation2 + $0x48] sm:$0xff] %vm1511, %v1504
        %1522 = vst.msk [vmem:[#allocation2 + $0x50] sm:$0xff] %vm1511, %v1505
        %1523 = vst.msk [vmem:[#allocation2 + $0x58] sm:$0xff] %vm1511, %v1506
        %1524 = vst.msk [vmem:[#allocation2 + $0x60] sm:$0xff] %vm1511, %v1507
        %1525 = vst.msk [vmem:[#allocation2 + $0x68] sm:$0xff] %vm1511, %v1508
        %1526 = vst.msk [vmem:[#allocation2 + $0x70] sm:$0xff] %vm1511, %v1509
        %1527 = vst.msk [vmem:[#allocation2 + $0x78] sm:$0xff] %vm1511, %v1510
        %p1528 = scmp.eq.s32.totalorder %s24, 1
        // Predicated region
        $region94: #{tpu_custom_call.1} parent=80 // pred_check
          %p1529 = pneg %p1528
        $region95: #{tpu_custom_call.1} parent=80 // pred_check_branch
          %1531 = sbr.rel (%p1529) target = $region97
        $region96: #{tpu_custom_call.1} parent=80 // pred_region
          %v1532 = vld [vmem:[#allocation2] sm:$0xff]
          %v1533 = vld [vmem:[#allocation2 + $0x8] sm:$0xff]
          %v1534 = vld [vmem:[#allocation2 + $0x10] sm:$0xff]
          %v1535 = vld [vmem:[#allocation2 + $0x18] sm:$0xff]
          %v1536 = vld [vmem:[#allocation2 + $0x20] sm:$0xff]
          %v1537 = vld [vmem:[#allocation2 + $0x28] sm:$0xff]
          %v1538 = vld [vmem:[#allocation2 + $0x30] sm:$0xff]
          %v1539 = vld [vmem:[#allocation2 + $0x38] sm:$0xff]
          %v1540 = vld [vmem:[#allocation2 + $0x40] sm:$0xff]
          %v1541 = vld [vmem:[#allocation2 + $0x48] sm:$0xff]
          %v1542 = vld [vmem:[#allocation2 + $0x50] sm:$0xff]
          %v1543 = vld [vmem:[#allocation2 + $0x58] sm:$0xff]
          %v1544 = vld [vmem:[#allocation2 + $0x60] sm:$0xff]
          %v1545 = vld [vmem:[#allocation2 + $0x68] sm:$0xff]
          %v1546 = vld [vmem:[#allocation2 + $0x70] sm:$0xff]
          %v1547 = vld [vmem:[#allocation2 + $0x78] sm:$0xff]
          %1548 = vxpose.xlu0.b32.start [1/16] %v1532, 128
          %1549 = vxpose.xlu0.b32.cont [2/16] %v1533, 128
          %1550 = vxpose.xlu0.b32.cont [3/16] %v1534, 128
          %1551 = vxpose.xlu0.b32.cont [4/16] %v1535, 128
          %1552 = vxpose.xlu0.b32.cont [5/16] %v1536, 128
          %1553 = vxpose.xlu0.b32.cont [6/16] %v1537, 128
          %1554 = vxpose.xlu0.b32.cont [7/16] %v1538, 128
          %1555 = vxpose.xlu0.b32.cont [8/16] %v1539, 128
          %1556 = vxpose.xlu0.b32.cont [9/16] %v1540, 128
          %1557 = vxpose.xlu0.b32.cont [10/16] %v1541, 128
          %1558 = vxpose.xlu0.b32.cont [11/16] %v1542, 128
          %1559 = vxpose.xlu0.b32.cont [12/16] %v1543, 128
          %1560 = vxpose.xlu0.b32.cont [13/16] %v1544, 128
          %1561 = vxpose.xlu0.b32.cont [14/16] %v1545, 128
          %1562 = vxpose.xlu0.b32.cont [15/16] %v1546, 128
          %1563 = vxpose.xlu0.b32.end [16/16] %v1547, 128
          %v1564 = vpop.trf.xlu0
          %v1565 = vpop.trf.xlu0
          %v1566 = vpop.trf.xlu0
          %v1567 = vpop.trf.xlu0
          %v1568 = vpop.trf.xlu0
          %v1569 = vpop.trf.xlu0
          %v1570 = vpop.trf.xlu0
          %v1571 = vpop.trf.xlu0
          %v1572 = vpop.trf.xlu0
          %v1573 = vpop.trf.xlu0
          %v1574 = vpop.trf.xlu0
          %v1575 = vpop.trf.xlu0
          %v1576 = vpop.trf.xlu0
          %v1577 = vpop.trf.xlu0
          %v1578 = vpop.trf.xlu0
          %v1579 = vpop.trf.xlu0
          %v1580 = vmul.f32 %v1564, 0.00390625
          %v1581 = vmul.f32 %v1580, %v1580
          %1582 = vadd.xlane.f32.xlu0 %v1581
          %v1583 = vpop.xlane.xlu0 %1582
          %v1584 = vrsqrt.pop %v1583
          %v1585 = vmul.f32 %v1584, %v1583
          %v1586 = vmul.f32 %v1585, %v1584
          %v1587 = vmul.f32 0.5, %v1586
          %v1588 = vsub.f32 1.5, %v1587
          %v1589 = vmul.f32 %v1584, %v1588
          %v1590 = vmul.f32 %v1583, %v1589
          %vm1591 = vcmp.eq.f32.partialorder %v1583, inf
          %v1592 = vsel %vm1591, %v1583, %v1590
          %vm1593 = vcmp.eq.f32.partialorder %v1583, 0.0
          %v1594 = vand.u32 %v1583, 2147483648
          %v1595 = vsel %vm1593, %v1594, %v1592
          %s1596 = sld [smem:[#allocation4]]
          %s1597 = sld [smem:[#allocation4 + $0x1]]
          %s1598 = sld [smem:[#allocation4 + $0x2]]
          %v1599 = vstv %s1596
          %v1600 = vsub.f32 %v1595, %v1599
          %v1601 = vstv %s1597
          %v1602 = vmul.f32 %v1600, %v1601
          %v1603 = vmul.f32 %v1602, %v1602
          %s1604 = sld [smem:[#allocation4 + $0x3]]
          %v1605 = vstv %s1604
          %v1606 = vmul.f32 %v1605, %v1602
          %v1607 = vmul.f32 %v1602, %v1603
          %s1608 = sld [smem:[#allocation4 + $0x4]]
          %v1609 = vstv %s1608
          %v1610 = vmul.f32 %v1609, %v1607
          %v1611 = vadd.f32 %v1606, %v1610
          %v1612 = vmul.f32 %v1607, %v1603
          %s1613 = sld [smem:[#allocation4 + $0x5]]
          %v1614 = vstv %s1613
          %v1615 = vmul.f32 %v1614, %v1612
          %v1616 = vadd.f32 %v1611, %v1615
          %v1617 = vmul.f32 %v1612, %v1603
          %s1618 = sld [smem:[#allocation4 + $0x6]]
          %v1619 = vstv %s1618
          %v1620 = vmul.f32 %v1619, %v1617
          %v1621 = vadd.f32 %v1616, %v1620
          %v1622 = vmul.f32 %v1617, %v1603
          %s1623 = sld [smem:[#allocation4 + $0x7]]
          %v1624 = vstv %s1623
          %v1625 = vmul.f32 %v1624, %v1622
          %v1626 = vadd.f32 %v1621, %v1625
          %v1627 = vstv %s1598
          %v1628 = vsub.f32 %v1626, %v1627
          %v1629 = vld [vmem:[%s3] sm:$0x1]
          %v1631 = vperm.slane %v1629, 0
          %v1633 = vmul.f32 %v1580, %v1631
          %v1634 = vld [vmem:[%s4] sm:$0x1]
          %v1636 = vperm.slane %v1634, 0
          %v1638 = vadd.f32 %v1633, %v1636
          %v1639 = vmul.f32 %v1638, %v1638
          %1640 = vadd.xlane.f32.xlu0 %v1639
          %v1641 = vpop.xlane.xlu0 %1640
          %v1642 = vmax.f32 %v1641, 1e-24
          %v1643 = vrsqrt.pop %v1642
          %v1644 = vmul.f32 %v1643, %v1642
          %v1645 = vmul.f32 %v1644, %v1643
          %v1646 = vmul.f32 0.5, %v1645
          %v1647 = vsub.f32 1.5, %v1646
          %v1648 = vmul.f32 %v1643, %v1647
          %vm1649 = vweird.f32 %v1642
          %vm1650 = vweird.f32 %v1643
          %vm1651 = vmor %vm1649, %vm1650
          %v1652 = vsel %vm1651, %v1643, %v1648
          %v1653 = vmul.f32 %v1595, %v1652
          %v1654 = vmul.f32 %v1638, %v1653
          %v1655 = vlaneseq
          %v1656 = vand.u32 %v1655, 127
          %vm1657 = vcmp.eq.s32.totalorder %v1656, 32
          %v1658 = vsel %vm1657, %v1628, %v1654
          %1659 = vst [vmem:[#allocation7] sm:$0xff] %v1658
        $region97: #{tpu_custom_call.1} parent=80 // pred_fallthru
          _
        // Predicated region
        $region98: #{tpu_custom_call.1} parent=80 // pred_check
          %p1660 = pneg %p182
        $region99: #{tpu_custom_call.1} parent=80 // pred_check_branch
          %1662 = sbr.rel (%p1660) target = $region101
        $region100: #{tpu_custom_call.1} parent=80 // pred_region
          %1664 = vsyncadd [#allocation5], 0
          %s1665 = smul.addr %s23, 8
          %s1666 = scalar_lea.hbm %s6, %s1665
          %s1668 = sshll.u32 [#allocation7], 4
          %s1669 = int_to_ptr.vmem [resolvable:$true] %s1668
          %s1670 = sshll.u32 %s1666, 4
          %s1671 = int_to_ptr.hbm [resolvable:$true] %s1670
          %1673 = dma.vmem_to_hbm [thread:$0]  %s1669, 128, %s1671, [#allocation5]
        $region101: #{tpu_custom_call.1} parent=80 // pred_fallthru
          _
        // Predicated region
        $region102: #{tpu_custom_call.1} parent=80 // pred_check
          %p1674 = pneg %p182
        $region103: #{tpu_custom_call.1} parent=80 // pred_check_branch
          %1676 = sbr.rel (%p1674) target = $region105
        $region104: #{tpu_custom_call.1} parent=80 // pred_region
          %1678 = dma.done [#allocation5], 128
        $region105: #{tpu_custom_call.1} parent=80 // pred_fallthru
          _
      $region81: #{tpu_custom_call.1} parent=5 // pred_fallthru
        _
      %p1679 = scmp.le.s32.totalorder 2, %s14
      // Predicated region
      $region106: #{tpu_custom_call.1} parent=5 // pred_check
        %p1680 = pneg %p1679
      $region107: #{tpu_custom_call.1} parent=5 // pred_check_branch
        %1682 = sbr.rel (%p1680) target = $region109
      $region108: #{tpu_custom_call.1} parent=5 // pred_region
        %s1683 = ssub.s32 %s14, 2
      $region109: #{tpu_custom_call.1} parent=5 // pred_fallthru
        _
    $region6: #{tpu_custom_call.1} parent=1 // loop_footer
      %s18 = sadd.s32 1, %s14
    $region7: #{tpu_custom_call.1} parent=1 // loop_footer_branch
      %13 = sbr.rel target = $region3
    $region8: #{tpu_custom_call.1} parent=1 // loop_exit
      _
    %1684 = vsyncpa [#allocation5], 1
    %s1685 = scalar_lea.sflag [#allocation5], 1
    %1686 = vsyncpa %s1685, 1
    %1687 = vsyncpa [#allocation6], 1
    %s1688 = scalar_lea.sflag [#allocation6], 1
    %1689 = vsyncpa %s1688, 1

</llo_original>
